<compile_context>
chip_gen: v7x
topology: tpu7x:2x2x1
jax: 0.10.0
libtpu: 0.0.40
codegen_flags: <defaults>
</compile_context>

<pallas_src>
import jax
import jax.numpy as jnp
from jax.experimental import pallas as pl
from jax.experimental.pallas import tpu as pltpu

LEVELS = (1, 2, 4, 7, 11, 14, 21, 28)
IN_LEN = 2048
NU = sum(LEVELS)                       # 88 unique pooled columns
NU_PAD = 128                           # pad to one full lane group (multiple of 128)
OUT_LEN = sum(k * k for k in LEVELS)   # 1612


def _build_unique_pool_matrix():
    """(2048, 128) f32 matrix: the 88 unique adaptive-avg-pool columns + zero pad."""
    idx = jnp.arange(IN_LEN)
    cols = []
    for k in LEVELS:
        for c in range(k):
            start = (c * IN_LEN) // k
            end = -((-(c + 1) * IN_LEN) // k)  # ceil((c+1)*IN_LEN/k)
            cols.append(jnp.where((idx >= start) & (idx < end),
                                  1.0 / float(end - start), 0.0))
    wu = jnp.stack(cols, axis=1)                            # (2048, 88)
    pad = jnp.zeros((IN_LEN, NU_PAD - NU), jnp.float32)
    return jnp.concatenate([wu, pad], axis=1).astype(jnp.float32)  # (2048, 128)


def spp_kernel(x_ref, w_ref, o_ref):
    # Single grid step, all operands VMEM-resident: (B, 2048) @ (2048, 128).
    o_ref[...] = jnp.dot(x_ref[...], w_ref[...],
                         preferred_element_type=jnp.float32)


@jax.jit
def spatial_pyramid_pooling(x, wu):
    B = x.shape[0]
    x2d = x.reshape(B, IN_LEN).astype(jnp.float32)

    pooled = pl.pallas_call(
        spp_kernel,
        out_shape=jax.ShapeDtypeStruct((B, NU_PAD), jnp.float32),
        grid_spec=pltpu.PrefetchScalarGridSpec(
            num_scalar_prefetch=0,
            grid=(1,),
            in_specs=[
                pl.BlockSpec((B, IN_LEN), lambda i: (0, 0)),
                pl.BlockSpec((IN_LEN, NU_PAD), lambda i: (0, 0)),
            ],
            out_specs=pl.BlockSpec((B, NU_PAD), lambda i: (0, 0)),
        ),
        compiler_params=pltpu.CompilerParams(
            dimension_semantics=("arbitrary",),
        ),
        cost_estimate=pl.CostEstimate(
            flops=2 * B * IN_LEN * NU_PAD,
            transcendentals=0,
            bytes_accessed=4 * (B * IN_LEN + IN_LEN * NU_PAD + B * NU_PAD),
        ),
    )(x2d, wu)

    # Exact replication of the 88 unique pooled values to the full 1612-wide
    # concatenated-SPP layout (each level's k-vector repeated k times).
    outs = []
    off = 0
    for k in LEVELS:
        level = pooled[:, off:off + k]       # (B, k)
        outs.append(jnp.tile(level, (1, k)))  # (B, k*k)
        off += k
    return jnp.concatenate(outs, axis=1)      # (B, 1612)


def _reference(x):
    """Pure-JAX reference matching the PyTorch forward exactly."""
    B = x.shape[0]
    v = x.reshape(B, IN_LEN).astype(jnp.float32)
    outs = []
    for k in LEVELS:
        pooled = []
        for c in range(k):
            s = (c * IN_LEN) // k
            e = -((-(c + 1) * IN_LEN) // k)
            pooled.append(v[:, s:e].mean(axis=1))
        p = jnp.stack(pooled, axis=1)        # (B, k)  == one pooled row
        outs.append(jnp.tile(p, (1, k)))     # (B, k*k): k identical rows flattened
    return jnp.concatenate(outs, axis=1)     # (B, 1612)


if __name__ == "__main__":
    key = jax.random.PRNGKey(0)
    # NCHW input with C*H*W == 2048 (matches x.view(B, 1, 2048))
    x = jax.random.normal(key, (2, 8, 16, 16), dtype=jnp.float32)

    wu = _build_unique_pool_matrix()  # deterministic fixed pooling "weights"

    out = spatial_pyramid_pooling(x, wu)
    out = jax.block_until_ready(out)

    ref = _reference(x)
    assert out.shape == (2, OUT_LEN), out.shape
    assert jnp.allclose(out, ref, atol=1e-5, rtol=1e-5), \
        float(jnp.max(jnp.abs(out - ref)))

    print("KERNEL_OK")
</pallas_src>

<mosaic_0001>
module attributes {stable_mosaic.version = 11 : i64} {
  func.func @spp_kernel(%arg0: i32, %arg1: memref<2x2048xf32, #tpu.memory_space<vmem>>, %arg2: memref<2048x128xf32, #tpu.memory_space<vmem>>, %arg3: memref<2x128xf32, #tpu.memory_space<vmem>>) attributes {dimension_semantics = [#tpu.dimension_semantics<arbitrary>], iteration_bounds = array<i64: 1>, scalar_prefetch = 0 : i64, scratch_operands = 0 : i64, tpu.core_type = #tpu.core_type<tc>, window_params = [{pipeline_mode = #tpu.pipeline_mode<synchronous>, transform_indices = @transform_0, window_bounds = array<i64: 2, 2048>}, {pipeline_mode = #tpu.pipeline_mode<synchronous>, transform_indices = @transform_1, window_bounds = array<i64: 2048, 128>}, {pipeline_mode = #tpu.pipeline_mode<synchronous>, transform_indices = @transform_2, window_bounds = array<i64: 2, 128>}]} {
    %c0 = arith.constant 0 : index
    %c0_0 = arith.constant 0 : index
    %0 = vector.load %arg1[%c0, %c0_0] : memref<2x2048xf32, #tpu.memory_space<vmem>>, vector<2x2048xf32>
    %c0_1 = arith.constant 0 : index
    %c0_2 = arith.constant 0 : index
    %1 = vector.load %arg2[%c0_1, %c0_2] : memref<2048x128xf32, #tpu.memory_space<vmem>>, vector<2048x128xf32>
    %cst = arith.constant dense<0.000000e+00> : vector<2x128xf32>
    %2 = tpu.matmul %0, %1, %cst {dimension_numbers = #tpu.dot_dimension_numbers<[1], [0], [0], [1], [0, 0, 1, 1], [], []>} : vector<2x2048xf32>, vector<2048x128xf32>, vector<2x128xf32> -> vector<2x128xf32>
    %c0_3 = arith.constant 0 : index
    %c0_4 = arith.constant 0 : index
    %3 = vector.load %arg3[%c0_3, %c0_4] : memref<2x128xf32, #tpu.memory_space<vmem>>, vector<2x128xf32>
    tpu.vector_store %arg3[%c0_3, %c0_4], %2 {strides = array<i32>} : memref<2x128xf32, #tpu.memory_space<vmem>>, vector<2x128xf32>,
    return
  }
  func.func @transform_0(%arg0: i32) -> (i32, i32) {
    %c0_i32 = arith.constant 0 : i32
    %c0_i32_0 = arith.constant 0 : i32
    %c0_i32_1 = arith.constant 0 : i32
    return %c0_i32, %c0_i32_0 : i32, i32
  }
  func.func @transform_1(%arg0: i32) -> (i32, i32) {
    %c0_i32 = arith.constant 0 : i32
    %c0_i32_0 = arith.constant 0 : i32
    %c0_i32_1 = arith.constant 0 : i32
    return %c0_i32, %c0_i32_0 : i32, i32
  }
  func.func @transform_2(%arg0: i32) -> (i32, i32) {
    %c0_i32 = arith.constant 0 : i32
    %c0_i32_0 = arith.constant 0 : i32
    %c0_i32_1 = arith.constant 0 : i32
    return %c0_i32, %c0_i32_0 : i32, i32
  }
}

</mosaic_0001>

<llo_original>
// kernel: tile.69
$region0: #{tile.69}
  %s0 = inlined_call_operand.vmem [shape: f32[2,28,28], index: 0, kind: input, shape index: {}]
  %s1 = inlined_call_operand.vmem [shape: f32[2,784], index: 1, kind: output, shape index: {}]
  $region1: #{tile.69} parent=0
    #allocation0 [shape = 'u8[28672]{0}', space=vmem, size = 0x7000, scoped, tag = 'scoped mem for output reshape']
    %v2 = vld [vmem:[%s0] sm:$0x1]
    %s3 = scalar_lea.vmem %s0, 31
    %v4 = vld [vmem:[%s3] sm:$0x2]
    %vm5 = vcmask 1041409
    %v6 = vsel %vm5, %v4, %v2
    %vm7 = vcmask 228352
    %8 = vst.msk [vmem:[#allocation0] sm:$0x3] %vm7, %v6
    %s9 = scalar_lea.vmem %s0, 9
    %v10 = vld [vmem:[%s9] sm:$0x1]
    %s11 = scalar_lea.vmem %s0, 40
    %v12 = vld [vmem:[%s11] sm:$0x2]
    %vm13 = vcmask 1041409
    %v14 = vsel %vm13, %v12, %v10
    %s15 = scalar_lea.vmem %s0, 9
    %v16 = vld [vmem:[%s15] sm:$0x1]
    %s17 = scalar_lea.vmem %s0, 40
    %v18 = vld [vmem:[%s17] sm:$0x2]
    %vm19 = vcmask 1041409
    %v20 = vsel %vm19, %v18, %v16
    %vm21 = vcmask 31744
    %v22 = vsel %vm21, %v20, %v14
    %23 = vrot.lane.b32.xlu0 %v22, 124
    %v24 = vpop.permute.xlu0 %23
    %vm25 = vcmask 195584
    %s26 = scalar_lea.vmem [#allocation0], 16
    %27 = vst.msk [vmem:[%s26] sm:$0x3] %vm25, %v24
    %vm28 = vcmask 1048544
    %s29 = scalar_lea.vmem [#allocation0], 8
    %30 = vst.msk [vmem:[%s29] sm:$0x3] %vm28, %v24
    %s31 = scalar_lea.vmem %s0, 18
    %v32 = vld [vmem:[%s31] sm:$0x1]
    %s33 = scalar_lea.vmem %s0, 49
    %v34 = vld [vmem:[%s33] sm:$0x2]
    %vm35 = vcmask 1041409
    %v36 = vsel %vm35, %v34, %v32
    %s37 = scalar_lea.vmem %s0, 18
    %v38 = vld [vmem:[%s37] sm:$0x1]
    %s39 = scalar_lea.vmem %s0, 49
    %v40 = vld [vmem:[%s39] sm:$0x2]
    %vm41 = vcmask 1041409
    %v42 = vsel %vm41, %v40, %v38
    %vm43 = vcmask 64512
    %v44 = vsel %vm43, %v42, %v36
    %45 = vrot.lane.b32.xlu0 %v44, 120
    %v46 = vpop.permute.xlu0 %45
    %vm47 = vcmask 162816
    %s48 = scalar_lea.vmem [#allocation0], 32
    %49 = vst.msk [vmem:[%s48] sm:$0x3] %vm47, %v46
    %vm50 = vcmask 1048512
    %s51 = scalar_lea.vmem [#allocation0], 24
    %52 = vst.msk [vmem:[%s51] sm:$0x3] %vm50, %v46
    %s53 = scalar_lea.vmem %s0, 27
    %v54 = vld [vmem:[%s53] sm:$0x1]
    %s55 = scalar_lea.vmem %s0, 58
    %v56 = vld [vmem:[%s55] sm:$0x2]
    %vm57 = vcmask 1041409
    %v58 = vsel %vm57, %v56, %v54
    %s59 = scalar_lea.vmem %s0, 27
    %v60 = vld [vmem:[%s59] sm:$0x1]
    %s61 = scalar_lea.vmem %s0, 58
    %v62 = vld [vmem:[%s61] sm:$0x2]
    %vm63 = vcmask 1041409
    %v64 = vsel %vm63, %v62, %v60
    %vm65 = vcmask 97280
    %v66 = vsel %vm65, %v64, %v58
    %67 = vrot.lane.b32.xlu0 %v66, 116
    %v68 = vpop.permute.xlu0 %67
    %vm69 = vcmask 130048
    %s70 = scalar_lea.vmem [#allocation0], 48
    %71 = vst.msk [vmem:[%s70] sm:$0x3] %vm69, %v68
    %vm72 = vcmask 1048480
    %s73 = scalar_lea.vmem [#allocation0], 40
    %74 = vst.msk [vmem:[%s73] sm:$0x3] %vm72, %v68
    %s75 = scalar_lea.vmem %s0, 4
    %v76 = vld [vmem:[%s75] sm:$0x1]
    %s77 = scalar_lea.vmem %s0, 35
    %v78 = vld [vmem:[%s77] sm:$0x2]
    %vm79 = vcmask 1041409
    %v80 = vsel %vm79, %v78, %v76
    %s81 = scalar_lea.vmem %s0, 4
    %v82 = vld [vmem:[%s81] sm:$0x1]
    %s83 = scalar_lea.vmem %s0, 35
    %v84 = vld [vmem:[%s83] sm:$0x2]
    %vm85 = vcmask 1041409
    %v86 = vsel %vm85, %v84, %v82
    %vm87 = vcmask 130048
    %v88 = vsel %vm87, %v86, %v80
    %89 = vrot.lane.b32.xlu0 %v88, 112
    %v90 = vpop.permute.xlu0 %89
    %vm91 = vcmask 97280
    %s92 = scalar_lea.vmem [#allocation0], 8
    %93 = vst.msk [vmem:[%s92] sm:$0x3] %vm91, %v90
    %vm94 = vcmask 1048448
    %95 = vst.msk [vmem:[#allocation0] sm:$0x3] %vm94, %v90
    %s96 = scalar_lea.vmem %s0, 13
    %v97 = vld [vmem:[%s96] sm:$0x1]
    %s98 = scalar_lea.vmem %s0, 44
    %v99 = vld [vmem:[%s98] sm:$0x2]
    %vm100 = vcmask 1041409
    %v101 = vsel %vm100, %v99, %v97
    %s102 = scalar_lea.vmem %s0, 13
    %v103 = vld [vmem:[%s102] sm:$0x1]
    %s104 = scalar_lea.vmem %s0, 44
    %v105 = vld [vmem:[%s104] sm:$0x2]
    %vm106 = vcmask 1041409
    %v107 = vsel %vm106, %v105, %v103
    %vm108 = vcmask 162816
    %v109 = vsel %vm108, %v107, %v101
    %110 = vrot.lane.b32.xlu0 %v109, 108
    %v111 = vpop.permute.xlu0 %110
    %vm112 = vcmask 64512
    %s113 = scalar_lea.vmem [#allocation0], 24
    %114 = vst.msk [vmem:[%s113] sm:$0x3] %vm112, %v111
    %vm115 = vcmask 1048416
    %s116 = scalar_lea.vmem [#allocation0], 16
    %117 = vst.msk [vmem:[%s116] sm:$0x3] %vm115, %v111
    %s118 = scalar_lea.vmem %s0, 22
    %v119 = vld [vmem:[%s118] sm:$0x1]
    %s120 = scalar_lea.vmem %s0, 53
    %v121 = vld [vmem:[%s120] sm:$0x2]
    %vm122 = vcmask 1041409
    %v123 = vsel %vm122, %v121, %v119
    %s124 = scalar_lea.vmem %s0, 22
    %v125 = vld [vmem:[%s124] sm:$0x1]
    %s126 = scalar_lea.vmem %s0, 53
    %v127 = vld [vmem:[%s126] sm:$0x2]
    %vm128 = vcmask 1041409
    %v129 = vsel %vm128, %v127, %v125
    %vm130 = vcmask 195584
    %v131 = vsel %vm130, %v129, %v123
    %132 = vrot.lane.b32.xlu0 %v131, 104
    %v133 = vpop.permute.xlu0 %132
    %vm134 = vcmask 31744
    %s135 = scalar_lea.vmem [#allocation0], 40
    %136 = vst.msk [vmem:[%s135] sm:$0x3] %vm134, %v133
    %vm137 = vcmask 1048384
    %s138 = scalar_lea.vmem [#allocation0], 32
    %139 = vst.msk [vmem:[%s138] sm:$0x3] %vm137, %v133
    %s140 = scalar_lea.vmem %s0, 8
    %v141 = vld [vmem:[%s140] sm:$0x1]
    %s142 = scalar_lea.vmem %s0, 39
    %v143 = vld [vmem:[%s142] sm:$0x2]
    %vm144 = vcmask 1041409
    %v145 = vsel %vm144, %v143, %v141
    %146 = vrot.lane.b32.xlu0 %v145, 96
    %v147 = vpop.permute.xlu0 %146
    %vm148 = vcmask 1015552
    %s149 = scalar_lea.vmem [#allocation0], 8
    %150 = vst.msk [vmem:[%s149] sm:$0x3] %vm148, %v147
    %s151 = scalar_lea.vmem %s0, 17
    %v152 = vld [vmem:[%s151] sm:$0x1]
    %s153 = scalar_lea.vmem %s0, 48
    %v154 = vld [vmem:[%s153] sm:$0x2]
    %vm155 = vcmask 1041409
    %v156 = vsel %vm155, %v154, %v152
    %157 = vrot.lane.b32.xlu0 %v156, 92
    %v158 = vpop.permute.xlu0 %157
    %vm159 = vcmask 982752
    %s160 = scalar_lea.vmem [#allocation0], 24
    %161 = vst.msk [vmem:[%s160] sm:$0x3] %vm159, %v158
    %s162 = scalar_lea.vmem %s0, 26
    %v163 = vld [vmem:[%s162] sm:$0x1]
    %s164 = scalar_lea.vmem %s0, 57
    %v165 = vld [vmem:[%s164] sm:$0x2]
    %vm166 = vcmask 1041409
    %v167 = vsel %vm166, %v165, %v163
    %168 = vrot.lane.b32.xlu0 %v167, 88
    %v169 = vpop.permute.xlu0 %168
    %vm170 = vcmask 949952
    %s171 = scalar_lea.vmem [#allocation0], 40
    %172 = vst.msk [vmem:[%s171] sm:$0x3] %vm170, %v169
    %s173 = scalar_lea.vmem %s0, 3
    %v174 = vld [vmem:[%s173] sm:$0x1]
    %s175 = scalar_lea.vmem %s0, 34
    %v176 = vld [vmem:[%s175] sm:$0x2]
    %vm177 = vcmask 1041409
    %v178 = vsel %vm177, %v176, %v174
    %179 = vrot.lane.b32.xlu0 %v178, 84
    %v180 = vpop.permute.xlu0 %179
    %vm181 = vcmask 917152
    %182 = vst.msk [vmem:[#allocation0] sm:$0x3] %vm181, %v180
    %s183 = scalar_lea.vmem %s0, 12
    %v184 = vld [vmem:[%s183] sm:$0x1]
    %s185 = scalar_lea.vmem %s0, 43
    %v186 = vld [vmem:[%s185] sm:$0x2]
    %vm187 = vcmask 1041409
    %v188 = vsel %vm187, %v186, %v184
    %189 = vrot.lane.b32.xlu0 %v188, 80
    %v190 = vpop.permute.xlu0 %189
    %vm191 = vcmask 884352
    %s192 = scalar_lea.vmem [#allocation0], 16
    %193 = vst.msk [vmem:[%s192] sm:$0x3] %vm191, %v190
    %s194 = scalar_lea.vmem %s0, 21
    %v195 = vld [vmem:[%s194] sm:$0x1]
    %s196 = scalar_lea.vmem %s0, 52
    %v197 = vld [vmem:[%s196] sm:$0x2]
    %vm198 = vcmask 1041409
    %v199 = vsel %vm198, %v197, %v195
    %200 = vrot.lane.b32.xlu0 %v199, 76
    %v201 = vpop.permute.xlu0 %200
    %vm202 = vcmask 851552
    %s203 = scalar_lea.vmem [#allocation0], 32
    %204 = vst.msk [vmem:[%s203] sm:$0x3] %vm202, %v201
    %s205 = scalar_lea.vmem %s0, 7
    %v206 = vld [vmem:[%s205] sm:$0x1]
    %s207 = scalar_lea.vmem %s0, 38
    %v208 = vld [vmem:[%s207] sm:$0x2]
    %vm209 = vcmask 1041409
    %v210 = vsel %vm209, %v208, %v206
    %211 = vrot.lane.b32.xlu0 %v210, 68
    %v212 = vpop.permute.xlu0 %211
    %vm213 = vcmask 785952
    %s214 = scalar_lea.vmem [#allocation0], 8
    %215 = vst.msk [vmem:[%s214] sm:$0x3] %vm213, %v212
    %s216 = scalar_lea.vmem %s0, 16
    %v217 = vld [vmem:[%s216] sm:$0x1]
    %s218 = scalar_lea.vmem %s0, 47
    %v219 = vld [vmem:[%s218] sm:$0x2]
    %vm220 = vcmask 1041409
    %v221 = vsel %vm220, %v219, %v217
    %222 = vrot.lane.b32.xlu0 %v221, 64
    %v223 = vpop.permute.xlu0 %222
    %vm224 = vcmask 753152
    %s225 = scalar_lea.vmem [#allocation0], 24
    %226 = vst.msk [vmem:[%s225] sm:$0x3] %vm224, %v223
    %s227 = scalar_lea.vmem %s0, 25
    %v228 = vld [vmem:[%s227] sm:$0x1]
    %s229 = scalar_lea.vmem %s0, 56
    %v230 = vld [vmem:[%s229] sm:$0x2]
    %vm231 = vcmask 1041409
    %v232 = vsel %vm231, %v230, %v228
    %233 = vrot.lane.b32.xlu0 %v232, 60
    %v234 = vpop.permute.xlu0 %233
    %vm235 = vcmask 720352
    %s236 = scalar_lea.vmem [#allocation0], 40
    %237 = vst.msk [vmem:[%s236] sm:$0x3] %vm235, %v234
    %s238 = scalar_lea.vmem %s0, 2
    %v239 = vld [vmem:[%s238] sm:$0x1]
    %s240 = scalar_lea.vmem %s0, 33
    %v241 = vld [vmem:[%s240] sm:$0x2]
    %vm242 = vcmask 1041409
    %v243 = vsel %vm242, %v241, %v239
    %244 = vrot.lane.b32.xlu0 %v243, 56
    %v245 = vpop.permute.xlu0 %244
    %vm246 = vcmask 687552
    %247 = vst.msk [vmem:[#allocation0] sm:$0x3] %vm246, %v245
    %s248 = scalar_lea.vmem %s0, 11
    %v249 = vld [vmem:[%s248] sm:$0x1]
    %s250 = scalar_lea.vmem %s0, 42
    %v251 = vld [vmem:[%s250] sm:$0x2]
    %vm252 = vcmask 1041409
    %v253 = vsel %vm252, %v251, %v249
    %254 = vrot.lane.b32.xlu0 %v253, 52
    %v255 = vpop.permute.xlu0 %254
    %vm256 = vcmask 654752
    %s257 = scalar_lea.vmem [#allocation0], 16
    %258 = vst.msk [vmem:[%s257] sm:$0x3] %vm256, %v255
    %s259 = scalar_lea.vmem %s0, 20
    %v260 = vld [vmem:[%s259] sm:$0x1]
    %s261 = scalar_lea.vmem %s0, 51
    %v262 = vld [vmem:[%s261] sm:$0x2]
    %vm263 = vcmask 1041409
    %v264 = vsel %vm263, %v262, %v260
    %265 = vrot.lane.b32.xlu0 %v264, 48
    %v266 = vpop.permute.xlu0 %265
    %vm267 = vcmask 621952
    %s268 = scalar_lea.vmem [#allocation0], 32
    %269 = vst.msk [vmem:[%s268] sm:$0x3] %vm267, %v266
    %s270 = scalar_lea.vmem %s0, 6
    %v271 = vld [vmem:[%s270] sm:$0x1]
    %s272 = scalar_lea.vmem %s0, 37
    %v273 = vld [vmem:[%s272] sm:$0x2]
    %vm274 = vcmask 1041409
    %v275 = vsel %vm274, %v273, %v271
    %276 = vrot.lane.b32.xlu0 %v275, 40
    %v277 = vpop.permute.xlu0 %276
    %vm278 = vcmask 556352
    %s279 = scalar_lea.vmem [#allocation0], 8
    %280 = vst.msk [vmem:[%s279] sm:$0x3] %vm278, %v277
    %s281 = scalar_lea.vmem %s0, 15
    %v282 = vld [vmem:[%s281] sm:$0x1]
    %s283 = scalar_lea.vmem %s0, 46
    %v284 = vld [vmem:[%s283] sm:$0x2]
    %vm285 = vcmask 1041409
    %v286 = vsel %vm285, %v284, %v282
    %287 = vrot.lane.b32.xlu0 %v286, 36
    %v288 = vpop.permute.xlu0 %287
    %vm289 = vcmask 523552
    %s290 = scalar_lea.vmem [#allocation0], 24
    %291 = vst.msk [vmem:[%s290] sm:$0x3] %vm289, %v288
    %s292 = scalar_lea.vmem %s0, 24
    %v293 = vld [vmem:[%s292] sm:$0x1]
    %s294 = scalar_lea.vmem %s0, 55
    %v295 = vld [vmem:[%s294] sm:$0x2]
    %vm296 = vcmask 1041409
    %v297 = vsel %vm296, %v295, %v293
    %298 = vrot.lane.b32.xlu0 %v297, 32
    %v299 = vpop.permute.xlu0 %298
    %vm300 = vcmask 490752
    %s301 = scalar_lea.vmem [#allocation0], 40
    %302 = vst.msk [vmem:[%s301] sm:$0x3] %vm300, %v299
    %s303 = scalar_lea.vmem %s0, 1
    %v304 = vld [vmem:[%s303] sm:$0x1]
    %s305 = scalar_lea.vmem %s0, 32
    %v306 = vld [vmem:[%s305] sm:$0x2]
    %vm307 = vcmask 1041409
    %v308 = vsel %vm307, %v306, %v304
    %309 = vrot.lane.b32.xlu0 %v308, 28
    %v310 = vpop.permute.xlu0 %309
    %vm311 = vcmask 457952
    %312 = vst.msk [vmem:[#allocation0] sm:$0x3] %vm311, %v310
    %s313 = scalar_lea.vmem %s0, 10
    %v314 = vld [vmem:[%s313] sm:$0x1]
    %s315 = scalar_lea.vmem %s0, 41
    %v316 = vld [vmem:[%s315] sm:$0x2]
    %vm317 = vcmask 1041409
    %v318 = vsel %vm317, %v316, %v314
    %319 = vrot.lane.b32.xlu0 %v318, 24
    %v320 = vpop.permute.xlu0 %319
    %vm321 = vcmask 425152
    %s322 = scalar_lea.vmem [#allocation0], 16
    %323 = vst.msk [vmem:[%s322] sm:$0x3] %vm321, %v320
    %s324 = scalar_lea.vmem %s0, 19
    %v325 = vld [vmem:[%s324] sm:$0x1]
    %s326 = scalar_lea.vmem %s0, 50
    %v327 = vld [vmem:[%s326] sm:$0x2]
    %vm328 = vcmask 1041409
    %v329 = vsel %vm328, %v327, %v325
    %330 = vrot.lane.b32.xlu0 %v329, 20
    %v331 = vpop.permute.xlu0 %330
    %vm332 = vcmask 392352
    %s333 = scalar_lea.vmem [#allocation0], 32
    %334 = vst.msk [vmem:[%s333] sm:$0x3] %vm332, %v331
    %s335 = scalar_lea.vmem %s0, 5
    %v336 = vld [vmem:[%s335] sm:$0x1]
    %s337 = scalar_lea.vmem %s0, 36
    %v338 = vld [vmem:[%s337] sm:$0x2]
    %vm339 = vcmask 1041409
    %v340 = vsel %vm339, %v338, %v336
    %341 = vrot.lane.b32.xlu0 %v340, 12
    %v342 = vpop.permute.xlu0 %341
    %vm343 = vcmask 326752
    %s344 = scalar_lea.vmem [#allocation0], 8
    %345 = vst.msk [vmem:[%s344] sm:$0x3] %vm343, %v342
    %s346 = scalar_lea.vmem %s0, 14
    %v347 = vld [vmem:[%s346] sm:$0x1]
    %s348 = scalar_lea.vmem %s0, 45
    %v349 = vld [vmem:[%s348] sm:$0x2]
    %vm350 = vcmask 1041409
    %v351 = vsel %vm350, %v349, %v347
    %352 = vrot.lane.b32.xlu0 %v351, 8
    %v353 = vpop.permute.xlu0 %352
    %vm354 = vcmask 293952
    %s355 = scalar_lea.vmem [#allocation0], 24
    %356 = vst.msk [vmem:[%s355] sm:$0x3] %vm354, %v353
    %s357 = scalar_lea.vmem %s0, 23
    %v358 = vld [vmem:[%s357] sm:$0x1]
    %s359 = scalar_lea.vmem %s0, 54
    %v360 = vld [vmem:[%s359] sm:$0x2]
    %vm361 = vcmask 1041409
    %v362 = vsel %vm361, %v360, %v358
    %363 = vrot.lane.b32.xlu0 %v362, 4
    %v364 = vpop.permute.xlu0 %363
    %vm365 = vcmask 261152
    %s366 = scalar_lea.vmem [#allocation0], 40
    %367 = vst.msk [vmem:[%s366] sm:$0x3] %vm365, %v364
    %s369 = sshllo.u32 0, 2
    %v371 = vld [vmem:[#allocation0] sm:%s369]
    %s372 = sshllo.u32 0, 2
    %373 = vst [vmem:[%s1] sm:%s372] %v371
    %s374 = scalar_lea.vmem [#allocation0], 8
    %v375 = vld [vmem:[%s374] sm:%s369]
    %s376 = sshllo.u32 0, 2
    %s377 = scalar_lea.vmem %s1, 2
    %378 = vst [vmem:[%s377] sm:%s376] %v375
    %s379 = scalar_lea.vmem [#allocation0], 16
    %v380 = vld [vmem:[%s379] sm:%s369]
    %s381 = sshllo.u32 0, 2
    %s382 = smul.addr 2, 2
    %s383 = scalar_lea.vmem %s1, %s382
    %384 = vst [vmem:[%s383] sm:%s381] %v380
    %s385 = scalar_lea.vmem [#allocation0], 24
    %v386 = vld [vmem:[%s385] sm:%s369]
    %s387 = sshllo.u32 0, 2
    %s388 = smul.addr 2, 3
    %s389 = scalar_lea.vmem %s1, %s388
    %390 = vst [vmem:[%s389] sm:%s387] %v386
    %s391 = scalar_lea.vmem [#allocation0], 32
    %v392 = vld [vmem:[%s391] sm:%s369]
    %s393 = sshllo.u32 0, 2
    %s394 = smul.addr 2, 4
    %s395 = scalar_lea.vmem %s1, %s394
    %396 = vst [vmem:[%s395] sm:%s393] %v392
    %s397 = scalar_lea.vmem [#allocation0], 40
    %v398 = vld [vmem:[%s397] sm:%s369]
    %s399 = sshllo.u32 0, 2
    %s400 = smul.addr 2, 5
    %s401 = scalar_lea.vmem %s1, %s400
    %402 = vst [vmem:[%s401] sm:%s399] %v398
    %s403 = scalar_lea.vmem [#allocation0], 48
    %v404 = vld [vmem:[%s403] sm:%s369]
    %s405 = sshllo.u32 0, 2
    %s406 = smul.addr 2, 6
    %s407 = scalar_lea.vmem %s1, %s406
    %408 = vst [vmem:[%s407] sm:%s405] %v404

// kernel: tile.64
$region0: #{tile.64}
  %s0 = inlined_call_operand.vmem [shape: f32[2,21,21], index: 0, kind: input, shape index: {}]
  %s1 = inlined_call_operand.vmem [shape: f32[2,441], index: 1, kind: output, shape index: {}]
  $region1: #{tile.64} parent=0
    #allocation0 [shape = 'u8[16384]{0}', space=vmem, size = 0x4000, scoped, tag = 'scoped mem for output reshape']
    %s2 = smov 3
    %v3 = vld [vmem:[%s0] ss:$24 sm:%s2]
    %vm4 = vcmask 171008
    %5 = vst.msk [vmem:[#allocation0] sm:$0x3] %vm4, %v3
    %s6 = scalar_lea.vmem %s0, 6
    %s7 = smov 3
    %v8 = vld [vmem:[%s6] ss:$24 sm:%s7]
    %s9 = scalar_lea.vmem %s0, 6
    %s10 = smov 3
    %v11 = vld [vmem:[%s9] ss:$24 sm:%s10]
    %vm12 = vcmask 15360
    %v13 = vsel %vm12, %v11, %v8
    %14 = vrot.lane.b32.xlu0 %v13, 126
    %v15 = vpop.permute.xlu0 %14
    %vm16 = vcmask 154624
    %s17 = scalar_lea.vmem [#allocation0], 8
    %18 = vst.msk [vmem:[%s17] sm:$0x3] %vm16, %v15
    %vm19 = vcmask 1048560
    %20 = vst.msk [vmem:[#allocation0] sm:$0x3] %vm19, %v15
    %s21 = scalar_lea.vmem %s0, 12
    %s22 = smov 3
    %v23 = vld [vmem:[%s21] ss:$24 sm:%s22]
    %s24 = scalar_lea.vmem %s0, 12
    %s25 = smov 3
    %v26 = vld [vmem:[%s24] ss:$24 sm:%s25]
    %vm27 = vcmask 31744
    %v28 = vsel %vm27, %v26, %v23
    %29 = vrot.lane.b32.xlu0 %v28, 124
    %v30 = vpop.permute.xlu0 %29
    %vm31 = vcmask 138240
    %s32 = scalar_lea.vmem [#allocation0], 16
    %33 = vst.msk [vmem:[%s32] sm:$0x3] %vm31, %v30
    %vm34 = vcmask 1048544
    %s35 = scalar_lea.vmem [#allocation0], 8
    %36 = vst.msk [vmem:[%s35] sm:$0x3] %vm34, %v30
    %s37 = scalar_lea.vmem %s0, 18
    %s38 = smov 3
    %v39 = vld [vmem:[%s37] ss:$24 sm:%s38]
    %s40 = scalar_lea.vmem %s0, 18
    %s41 = smov 3
    %v42 = vld [vmem:[%s40] ss:$24 sm:%s41]
    %vm43 = vcmask 48128
    %v44 = vsel %vm43, %v42, %v39
    %45 = vrot.lane.b32.xlu0 %v44, 122
    %v46 = vpop.permute.xlu0 %45
    %vm47 = vcmask 121856
    %s48 = scalar_lea.vmem [#allocation0], 24
    %49 = vst.msk [vmem:[%s48] sm:$0x3] %vm47, %v46
    %vm50 = vcmask 1048528
    %s51 = scalar_lea.vmem [#allocation0], 16
    %52 = vst.msk [vmem:[%s51] sm:$0x3] %vm50, %v46
    %s53 = scalar_lea.vmem %s0, 5
    %s54 = smov 3
    %v55 = vld [vmem:[%s53] ss:$24 sm:%s54]
    %56 = vrot.lane.b32.xlu0 %v55, 105
    %v57 = vpop.permute.xlu0 %56
    %vm58 = vcmask 1032008
    %59 = vst.msk [vmem:[#allocation0] sm:$0x3] %vm58, %v57
    %s60 = scalar_lea.vmem %s0, 11
    %s61 = smov 3
    %v62 = vld [vmem:[%s60] ss:$24 sm:%s61]
    %63 = vrot.lane.b32.xlu0 %v62, 103
    %v64 = vpop.permute.xlu0 %63
    %vm65 = vcmask 1015608
    %s66 = scalar_lea.vmem [#allocation0], 8
    %67 = vst.msk [vmem:[%s66] sm:$0x3] %vm65, %v64
    %s68 = scalar_lea.vmem %s0, 17
    %s69 = smov 3
    %v70 = vld [vmem:[%s68] ss:$24 sm:%s69]
    %71 = vrot.lane.b32.xlu0 %v70, 101
    %v72 = vpop.permute.xlu0 %71
    %vm73 = vcmask 999208
    %s74 = scalar_lea.vmem [#allocation0], 16
    %75 = vst.msk [vmem:[%s74] sm:$0x3] %vm73, %v72
    %s76 = scalar_lea.vmem %s0, 4
    %s77 = smov 3
    %v78 = vld [vmem:[%s76] ss:$24 sm:%s77]
    %79 = vrot.lane.b32.xlu0 %v78, 84
    %v80 = vpop.permute.xlu0 %79
    %vm81 = vcmask 859808
    %82 = vst.msk [vmem:[#allocation0] sm:$0x3] %vm81, %v80
    %s83 = scalar_lea.vmem %s0, 10
    %s84 = smov 3
    %v85 = vld [vmem:[%s83] ss:$24 sm:%s84]
    %86 = vrot.lane.b32.xlu0 %v85, 82
    %v87 = vpop.permute.xlu0 %86
    %vm88 = vcmask 843408
    %s89 = scalar_lea.vmem [#allocation0], 8
    %90 = vst.msk [vmem:[%s89] sm:$0x3] %vm88, %v87
    %s91 = scalar_lea.vmem %s0, 16
    %s92 = smov 3
    %v93 = vld [vmem:[%s91] ss:$24 sm:%s92]
    %94 = vrot.lane.b32.xlu0 %v93, 80
    %v95 = vpop.permute.xlu0 %94
    %vm96 = vcmask 827008
    %s97 = scalar_lea.vmem [#allocation0], 16
    %98 = vst.msk [vmem:[%s97] sm:$0x3] %vm96, %v95
    %s99 = scalar_lea.vmem %s0, 3
    %s100 = smov 3
    %v101 = vld [vmem:[%s99] ss:$24 sm:%s100]
    %102 = vrot.lane.b32.xlu0 %v101, 63
    %v103 = vpop.permute.xlu0 %102
    %vm104 = vcmask 687608
    %105 = vst.msk [vmem:[#allocation0] sm:$0x3] %vm104, %v103
    %s106 = scalar_lea.vmem %s0, 9
    %s107 = smov 3
    %v108 = vld [vmem:[%s106] ss:$24 sm:%s107]
    %109 = vrot.lane.b32.xlu0 %v108, 61
    %v110 = vpop.permute.xlu0 %109
    %vm111 = vcmask 671208
    %s112 = scalar_lea.vmem [#allocation0], 8
    %113 = vst.msk [vmem:[%s112] sm:$0x3] %vm111, %v110
    %s114 = scalar_lea.vmem %s0, 15
    %s115 = smov 3
    %v116 = vld [vmem:[%s114] ss:$24 sm:%s115]
    %117 = vrot.lane.b32.xlu0 %v116, 59
    %v118 = vpop.permute.xlu0 %117
    %vm119 = vcmask 654808
    %s120 = scalar_lea.vmem [#allocation0], 16
    %121 = vst.msk [vmem:[%s120] sm:$0x3] %vm119, %v118
    %s122 = scalar_lea.vmem %s0, 2
    %s123 = smov 3
    %v124 = vld [vmem:[%s122] ss:$24 sm:%s123]
    %125 = vrot.lane.b32.xlu0 %v124, 42
    %v126 = vpop.permute.xlu0 %125
    %vm127 = vcmask 515408
    %128 = vst.msk [vmem:[#allocation0] sm:$0x3] %vm127, %v126
    %s129 = scalar_lea.vmem %s0, 8
    %s130 = smov 3
    %v131 = vld [vmem:[%s129] ss:$24 sm:%s130]
    %132 = vrot.lane.b32.xlu0 %v131, 40
    %v133 = vpop.permute.xlu0 %132
    %vm134 = vcmask 499008
    %s135 = scalar_lea.vmem [#allocation0], 8
    %136 = vst.msk [vmem:[%s135] sm:$0x3] %vm134, %v133
    %s137 = scalar_lea.vmem %s0, 14
    %s138 = smov 3
    %v139 = vld [vmem:[%s137] ss:$24 sm:%s138]
    %140 = vrot.lane.b32.xlu0 %v139, 38
    %v141 = vpop.permute.xlu0 %140
    %vm142 = vcmask 482608
    %s143 = scalar_lea.vmem [#allocation0], 16
    %144 = vst.msk [vmem:[%s143] sm:$0x3] %vm142, %v141
    %s145 = scalar_lea.vmem %s0, 20
    %s146 = smov 3
    %v147 = vld [vmem:[%s145] ss:$24 sm:%s146]
    %148 = vrot.lane.b32.xlu0 %v147, 36
    %v149 = vpop.permute.xlu0 %148
    %vm150 = vcmask 466208
    %s151 = scalar_lea.vmem [#allocation0], 24
    %152 = vst.msk [vmem:[%s151] sm:$0x3] %vm150, %v149
    %s153 = scalar_lea.vmem %s0, 1
    %s154 = smov 3
    %v155 = vld [vmem:[%s153] ss:$24 sm:%s154]
    %156 = vrot.lane.b32.xlu0 %v155, 21
    %v157 = vpop.permute.xlu0 %156
    %vm158 = vcmask 343208
    %159 = vst.msk [vmem:[#allocation0] sm:$0x3] %vm158, %v157
    %s160 = scalar_lea.vmem %s0, 7
    %s161 = smov 3
    %v162 = vld [vmem:[%s160] ss:$24 sm:%s161]
    %163 = vrot.lane.b32.xlu0 %v162, 19
    %v164 = vpop.permute.xlu0 %163
    %vm165 = vcmask 326808
    %s166 = scalar_lea.vmem [#allocation0], 8
    %167 = vst.msk [vmem:[%s166] sm:$0x3] %vm165, %v164
    %s168 = scalar_lea.vmem %s0, 13
    %s169 = smov 3
    %v170 = vld [vmem:[%s168] ss:$24 sm:%s169]
    %171 = vrot.lane.b32.xlu0 %v170, 17
    %v172 = vpop.permute.xlu0 %171
    %vm173 = vcmask 310408
    %s174 = scalar_lea.vmem [#allocation0], 16
    %175 = vst.msk [vmem:[%s174] sm:$0x3] %vm173, %v172
    %s176 = scalar_lea.vmem %s0, 19
    %s177 = smov 3
    %v178 = vld [vmem:[%s176] ss:$24 sm:%s177]
    %179 = vrot.lane.b32.xlu0 %v178, 15
    %v180 = vpop.permute.xlu0 %179
    %vm181 = vcmask 294008
    %s182 = scalar_lea.vmem [#allocation0], 24
    %183 = vst.msk [vmem:[%s182] sm:$0x3] %vm181, %v180
    %s185 = sshllo.u32 0, 2
    %v187 = vld [vmem:[#allocation0] sm:%s185]
    %s188 = sshllo.u32 0, 2
    %189 = vst [vmem:[%s1] sm:%s188] %v187
    %s190 = scalar_lea.vmem [#allocation0], 8
    %v191 = vld [vmem:[%s190] sm:%s185]
    %s192 = sshllo.u32 0, 2
    %s193 = scalar_lea.vmem %s1, 2
    %194 = vst [vmem:[%s193] sm:%s192] %v191
    %s195 = scalar_lea.vmem [#allocation0], 16
    %v196 = vld [vmem:[%s195] sm:%s185]
    %s197 = sshllo.u32 0, 2
    %s198 = smul.addr 2, 2
    %s199 = scalar_lea.vmem %s1, %s198
    %200 = vst [vmem:[%s199] sm:%s197] %v196
    %s201 = scalar_lea.vmem [#allocation0], 24
    %v202 = vld [vmem:[%s201] sm:%s185]
    %s203 = sshllo.u32 0, 2
    %s204 = smul.addr 2, 3
    %s205 = scalar_lea.vmem %s1, %s204
    %206 = vst [vmem:[%s205] sm:%s203] %v202

// kernel: tile.59
$region0: #{tile.59}
  %s0 = inlined_call_operand.vmem [shape: f32[2,14,14], index: 0, kind: input, shape index: {}]
  %s1 = inlined_call_operand.vmem [shape: f32[2,196], index: 1, kind: output, shape index: {}]
  $region1: #{tile.59} parent=0
    #allocation0 [shape = 'u8[8192]{0}', space=vmem, size = 0x2000, scoped, tag = 'scoped mem for output reshape']
    %s2 = smov 3
    %v3 = vld [vmem:[%s0] ss:$16 sm:%s2]
    %vm4 = vcmask 113664
    %5 = vst.msk [vmem:[#allocation0] sm:$0x3] %vm4, %v3
    %s6 = scalar_lea.vmem %s0, 9
    %s7 = smov 3
    %v8 = vld [vmem:[%s6] ss:$16 sm:%s7]
    %s9 = scalar_lea.vmem %s0, 9
    %s10 = smov 3
    %v11 = vld [vmem:[%s9] ss:$16 sm:%s10]
    %vm12 = vcmask 15360
    %v13 = vsel %vm12, %v11, %v8
    %14 = vrot.lane.b32.xlu0 %v13, 126
    %v15 = vpop.permute.xlu0 %14
    %vm16 = vcmask 97280
    %s17 = scalar_lea.vmem [#allocation0], 8
    %18 = vst.msk [vmem:[%s17] sm:$0x3] %vm16, %v15
    %vm19 = vcmask 1048560
    %20 = vst.msk [vmem:[#allocation0] sm:$0x3] %vm19, %v15
    %s21 = scalar_lea.vmem %s0, 8
    %s22 = smov 3
    %v23 = vld [vmem:[%s21] ss:$16 sm:%s22]
    %24 = vrot.lane.b32.xlu0 %v23, 112
    %v25 = vpop.permute.xlu0 %24
    %vm26 = vcmask 1032064
    %27 = vst.msk [vmem:[#allocation0] sm:$0x3] %vm26, %v25
    %s28 = scalar_lea.vmem %s0, 7
    %s29 = smov 3
    %v30 = vld [vmem:[%s28] ss:$16 sm:%s29]
    %31 = vrot.lane.b32.xlu0 %v30, 98
    %v32 = vpop.permute.xlu0 %31
    %vm33 = vcmask 917264
    %34 = vst.msk [vmem:[#allocation0] sm:$0x3] %vm33, %v32
    %s35 = scalar_lea.vmem %s0, 6
    %s36 = smov 3
    %v37 = vld [vmem:[%s35] ss:$16 sm:%s36]
    %38 = vrot.lane.b32.xlu0 %v37, 84
    %v39 = vpop.permute.xlu0 %38
    %vm40 = vcmask 802464
    %41 = vst.msk [vmem:[#allocation0] sm:$0x3] %vm40, %v39
    %s42 = scalar_lea.vmem %s0, 5
    %s43 = smov 3
    %v44 = vld [vmem:[%s42] ss:$16 sm:%s43]
    %45 = vrot.lane.b32.xlu0 %v44, 70
    %v46 = vpop.permute.xlu0 %45
    %vm47 = vcmask 687664
    %48 = vst.msk [vmem:[#allocation0] sm:$0x3] %vm47, %v46
    %s49 = scalar_lea.vmem %s0, 4
    %s50 = smov 3
    %v51 = vld [vmem:[%s49] ss:$16 sm:%s50]
    %52 = vrot.lane.b32.xlu0 %v51, 56
    %v53 = vpop.permute.xlu0 %52
    %vm54 = vcmask 572864
    %55 = vst.msk [vmem:[#allocation0] sm:$0x3] %vm54, %v53
    %s56 = scalar_lea.vmem %s0, 13
    %s57 = smov 3
    %v58 = vld [vmem:[%s56] ss:$16 sm:%s57]
    %59 = vrot.lane.b32.xlu0 %v58, 54
    %v60 = vpop.permute.xlu0 %59
    %vm61 = vcmask 556464
    %s62 = scalar_lea.vmem [#allocation0], 8
    %63 = vst.msk [vmem:[%s62] sm:$0x3] %vm61, %v60
    %s64 = scalar_lea.vmem %s0, 3
    %s65 = smov 3
    %v66 = vld [vmem:[%s64] ss:$16 sm:%s65]
    %67 = vrot.lane.b32.xlu0 %v66, 42
    %v68 = vpop.permute.xlu0 %67
    %vm69 = vcmask 458064
    %70 = vst.msk [vmem:[#allocation0] sm:$0x3] %vm69, %v68
    %s71 = scalar_lea.vmem %s0, 12
    %s72 = smov 3
    %v73 = vld [vmem:[%s71] ss:$16 sm:%s72]
    %74 = vrot.lane.b32.xlu0 %v73, 40
    %v75 = vpop.permute.xlu0 %74
    %vm76 = vcmask 441664
    %s77 = scalar_lea.vmem [#allocation0], 8
    %78 = vst.msk [vmem:[%s77] sm:$0x3] %vm76, %v75
    %s79 = scalar_lea.vmem %s0, 2
    %s80 = smov 3
    %v81 = vld [vmem:[%s79] ss:$16 sm:%s80]
    %82 = vrot.lane.b32.xlu0 %v81, 28
    %v83 = vpop.permute.xlu0 %82
    %vm84 = vcmask 343264
    %85 = vst.msk [vmem:[#allocation0] sm:$0x3] %vm84, %v83
    %s86 = scalar_lea.vmem %s0, 11
    %s87 = smov 3
    %v88 = vld [vmem:[%s86] ss:$16 sm:%s87]
    %89 = vrot.lane.b32.xlu0 %v88, 26
    %v90 = vpop.permute.xlu0 %89
    %vm91 = vcmask 326864
    %s92 = scalar_lea.vmem [#allocation0], 8
    %93 = vst.msk [vmem:[%s92] sm:$0x3] %vm91, %v90
    %s94 = scalar_lea.vmem %s0, 1
    %s95 = smov 3
    %v96 = vld [vmem:[%s94] ss:$16 sm:%s95]
    %97 = vrot.lane.b32.xlu0 %v96, 14
    %v98 = vpop.permute.xlu0 %97
    %vm99 = vcmask 228464
    %100 = vst.msk [vmem:[#allocation0] sm:$0x3] %vm99, %v98
    %s101 = scalar_lea.vmem %s0, 10
    %s102 = smov 3
    %v103 = vld [vmem:[%s101] ss:$16 sm:%s102]
    %104 = vrot.lane.b32.xlu0 %v103, 12
    %v105 = vpop.permute.xlu0 %104
    %vm106 = vcmask 212064
    %s107 = scalar_lea.vmem [#allocation0], 8
    %108 = vst.msk [vmem:[%s107] sm:$0x3] %vm106, %v105
    %s110 = sshllo.u32 0, 2
    %v112 = vld [vmem:[#allocation0] sm:%s110]
    %s113 = sshllo.u32 0, 2
    %114 = vst [vmem:[%s1] sm:%s113] %v112
    %s115 = scalar_lea.vmem [#allocation0], 8
    %v116 = vld [vmem:[%s115] sm:%s110]
    %s117 = sshllo.u32 0, 2
    %s118 = scalar_lea.vmem %s1, 2
    %119 = vst [vmem:[%s118] sm:%s117] %v116

// kernel: tile.54
$region0: #{tile.54}
  %s0 = inlined_call_operand.vmem [shape: f32[2,11,11], index: 0, kind: input, shape index: {}]
  %s1 = inlined_call_operand.vmem [shape: f32[2,121], index: 1, kind: output, shape index: {}]
  $region1: #{tile.54} parent=0
    #allocation0 [shape = 'u8[4096]{0}', space=vmem, size = 0x1000, scoped, tag = 'scoped mem for output reshape']
    %s2 = smov 3
    %v3 = vld [vmem:[%s0] ss:$16 sm:%s2]
    %vm4 = vcmask 89088
    %5 = vst.msk [vmem:[#allocation0] sm:$0x3] %vm4, %v3
    %s6 = scalar_lea.vmem %s0, 10
    %s7 = smov 3
    %v8 = vld [vmem:[%s6] ss:$16 sm:%s7]
    %9 = vrot.lane.b32.xlu0 %v8, 110
    %v10 = vpop.permute.xlu0 %9
    %vm11 = vcmask 991088
    %12 = vst.msk [vmem:[#allocation0] sm:$0x3] %vm11, %v10
    %s13 = scalar_lea.vmem %s0, 9
    %s14 = smov 3
    %v15 = vld [vmem:[%s13] ss:$16 sm:%s14]
    %16 = vrot.lane.b32.xlu0 %v15, 99
    %v17 = vpop.permute.xlu0 %16
    %vm18 = vcmask 900888
    %19 = vst.msk [vmem:[#allocation0] sm:$0x3] %vm18, %v17
    %s20 = scalar_lea.vmem %s0, 8
    %s21 = smov 3
    %v22 = vld [vmem:[%s20] ss:$16 sm:%s21]
    %23 = vrot.lane.b32.xlu0 %v22, 88
    %v24 = vpop.permute.xlu0 %23
    %vm25 = vcmask 810688
    %26 = vst.msk [vmem:[#allocation0] sm:$0x3] %vm25, %v24
    %s27 = scalar_lea.vmem %s0, 7
    %s28 = smov 3
    %v29 = vld [vmem:[%s27] ss:$16 sm:%s28]
    %30 = vrot.lane.b32.xlu0 %v29, 77
    %v31 = vpop.permute.xlu0 %30
    %vm32 = vcmask 720488
    %33 = vst.msk [vmem:[#allocation0] sm:$0x3] %vm32, %v31
    %s34 = scalar_lea.vmem %s0, 6
    %s35 = smov 3
    %v36 = vld [vmem:[%s34] ss:$16 sm:%s35]
    %37 = vrot.lane.b32.xlu0 %v36, 66
    %v38 = vpop.permute.xlu0 %37
    %vm39 = vcmask 630288
    %40 = vst.msk [vmem:[#allocation0] sm:$0x3] %vm39, %v38
    %s41 = scalar_lea.vmem %s0, 5
    %s42 = smov 3
    %v43 = vld [vmem:[%s41] ss:$16 sm:%s42]
    %44 = vrot.lane.b32.xlu0 %v43, 55
    %v45 = vpop.permute.xlu0 %44
    %vm46 = vcmask 540088
    %47 = vst.msk [vmem:[#allocation0] sm:$0x3] %vm46, %v45
    %s48 = scalar_lea.vmem %s0, 4
    %s49 = smov 3
    %v50 = vld [vmem:[%s48] ss:$16 sm:%s49]
    %51 = vrot.lane.b32.xlu0 %v50, 44
    %v52 = vpop.permute.xlu0 %51
    %vm53 = vcmask 449888
    %54 = vst.msk [vmem:[#allocation0] sm:$0x3] %vm53, %v52
    %s55 = scalar_lea.vmem %s0, 3
    %s56 = smov 3
    %v57 = vld [vmem:[%s55] ss:$16 sm:%s56]
    %58 = vrot.lane.b32.xlu0 %v57, 33
    %v59 = vpop.permute.xlu0 %58
    %vm60 = vcmask 359688
    %61 = vst.msk [vmem:[#allocation0] sm:$0x3] %vm60, %v59
    %s62 = scalar_lea.vmem %s0, 2
    %s63 = smov 3
    %v64 = vld [vmem:[%s62] ss:$16 sm:%s63]
    %65 = vrot.lane.b32.xlu0 %v64, 22
    %v66 = vpop.permute.xlu0 %65
    %vm67 = vcmask 269488
    %68 = vst.msk [vmem:[#allocation0] sm:$0x3] %vm67, %v66
    %s69 = scalar_lea.vmem %s0, 1
    %s70 = smov 3
    %v71 = vld [vmem:[%s69] ss:$16 sm:%s70]
    %72 = vrot.lane.b32.xlu0 %v71, 11
    %v73 = vpop.permute.xlu0 %72
    %vm74 = vcmask 179288
    %75 = vst.msk [vmem:[#allocation0] sm:$0x3] %vm74, %v73
    %s77 = sshllo.u32 0, 2
    %v79 = vld [vmem:[#allocation0] sm:%s77]
    %s80 = sshllo.u32 0, 2
    %81 = vst [vmem:[%s1] sm:%s80] %v79

// kernel: tile.49
$region0: #{tile.49}
  %s0 = inlined_call_operand.vmem [shape: f32[2,7,7], index: 0, kind: input, shape index: {}]
  %s1 = inlined_call_operand.vmem [shape: f32[2,49], index: 1, kind: output, shape index: {}]
  $region1: #{tile.49} parent=0
    #allocation0 [shape = 'u8[4096]{0}', space=vmem, size = 0x1000, scoped, tag = 'scoped mem for output reshape']
    %s2 = smov 3
    %v3 = vld [vmem:[%s0] ss:$8 sm:%s2]
    %vm4 = vcmask 56320
    %5 = vst.msk [vmem:[#allocation0] sm:$0x3] %vm4, %v3
    %s6 = scalar_lea.vmem %s0, 6
    %s7 = smov 3
    %v8 = vld [vmem:[%s6] ss:$8 sm:%s7]
    %9 = vrot.lane.b32.xlu0 %v8, 42
    %v10 = vpop.permute.xlu0 %9
    %vm11 = vcmask 400720
    %12 = vst.msk [vmem:[#allocation0] sm:$0x3] %vm11, %v10
    %s13 = scalar_lea.vmem %s0, 5
    %s14 = smov 3
    %v15 = vld [vmem:[%s13] ss:$8 sm:%s14]
    %16 = vrot.lane.b32.xlu0 %v15, 35
    %v17 = vpop.permute.xlu0 %16
    %vm18 = vcmask 343320
    %19 = vst.msk [vmem:[#allocation0] sm:$0x3] %vm18, %v17
    %s20 = scalar_lea.vmem %s0, 4
    %s21 = smov 3
    %v22 = vld [vmem:[%s20] ss:$8 sm:%s21]
    %23 = vrot.lane.b32.xlu0 %v22, 28
    %v24 = vpop.permute.xlu0 %23
    %vm25 = vcmask 285920
    %26 = vst.msk [vmem:[#allocation0] sm:$0x3] %vm25, %v24
    %s27 = scalar_lea.vmem %s0, 3
    %s28 = smov 3
    %v29 = vld [vmem:[%s27] ss:$8 sm:%s28]
    %30 = vrot.lane.b32.xlu0 %v29, 21
    %v31 = vpop.permute.xlu0 %30
    %vm32 = vcmask 228520
    %33 = vst.msk [vmem:[#allocation0] sm:$0x3] %vm32, %v31
    %s34 = scalar_lea.vmem %s0, 2
    %s35 = smov 3
    %v36 = vld [vmem:[%s34] ss:$8 sm:%s35]
    %37 = vrot.lane.b32.xlu0 %v36, 14
    %v38 = vpop.permute.xlu0 %37
    %vm39 = vcmask 171120
    %40 = vst.msk [vmem:[#allocation0] sm:$0x3] %vm39, %v38
    %s41 = scalar_lea.vmem %s0, 1
    %s42 = smov 3
    %v43 = vld [vmem:[%s41] ss:$8 sm:%s42]
    %44 = vrot.lane.b32.xlu0 %v43, 7
    %v45 = vpop.permute.xlu0 %44
    %vm46 = vcmask 113720
    %47 = vst.msk [vmem:[#allocation0] sm:$0x3] %vm46, %v45
    %s49 = sshllo.u32 0, 2
    %v51 = vld [vmem:[#allocation0] sm:%s49]
    %s52 = sshllo.u32 0, 2
    %53 = vst [vmem:[%s1] sm:%s52] %v51

// kernel: tile.44
$region0: #{tile.44}
  %s0 = inlined_call_operand.vmem [shape: f32[2,4,4], index: 0, kind: input, shape index: {}]
  %s1 = inlined_call_operand.vmem [shape: f32[2,16], index: 1, kind: output, shape index: {}]
  $region1: #{tile.44} parent=0
    #allocation0 [shape = 'u8[4096]{0}', space=vmem, size = 0x1000, scoped, tag = 'scoped mem for output reshape']
    #allocation1 [shape = 'u8[8192]{0}', space=vmem, size = 0x2000, scoped, tag = 'scoped mem for input reshape']
    %s3 = sshllo.u32 0, 4
    %s4 = scalar_lea.vmem %s0, 4
    %v5 = vld [vmem:[%s4] sm:%s3]
    %s6 = scalar_lea.vmem [#allocation1], 8
    %7 = vst [vmem:[%s6] sm:%s3] %v5
    %v8 = vld [vmem:[%s0] sm:%s3]
    %9 = vst [vmem:[#allocation1] sm:%s3] %v8
    %s10 = smov 3
    %v11 = vld [vmem:[#allocation1] ss:$8 sm:%s10]
    %vm12 = vcmask 31744
    %13 = vst.msk [vmem:[#allocation0] sm:$0x3] %vm12, %v11
    %s14 = scalar_lea.vmem [#allocation1], 3
    %s15 = smov 3
    %v16 = vld [vmem:[%s14] ss:$8 sm:%s15]
    %17 = vrot.lane.b32.xlu0 %v16, 12
    %v18 = vpop.permute.xlu0 %17
    %vm19 = vcmask 130144
    %20 = vst.msk [vmem:[#allocation0] sm:$0x3] %vm19, %v18
    %s21 = scalar_lea.vmem [#allocation1], 2
    %s22 = smov 3
    %v23 = vld [vmem:[%s21] ss:$8 sm:%s22]
    %24 = vrot.lane.b32.xlu0 %v23, 8
    %v25 = vpop.permute.xlu0 %24
    %vm26 = vcmask 97344
    %27 = vst.msk [vmem:[#allocation0] sm:$0x3] %vm26, %v25
    %s28 = scalar_lea.vmem [#allocation1], 1
    %s29 = smov 3
    %v30 = vld [vmem:[%s28] ss:$8 sm:%s29]
    %31 = vrot.lane.b32.xlu0 %v30, 4
    %v32 = vpop.permute.xlu0 %31
    %vm33 = vcmask 64544
    %34 = vst.msk [vmem:[#allocation0] sm:$0x3] %vm33, %v32
    %s36 = sshllo.u32 0, 2
    %v38 = vld [vmem:[#allocation0] sm:%s36]
    %s39 = sshllo.u32 0, 2
    %40 = vst [vmem:[%s1] sm:%s39] %v38

// kernel: tile.39
$region0: #{tile.39}
  %s0 = inlined_call_operand.vmem [shape: f32[2,2,2], index: 0, kind: input, shape index: {}]
  %s1 = inlined_call_operand.vmem [shape: f32[2,4], index: 1, kind: output, shape index: {}]
  $region1: #{tile.39} parent=0
    #allocation0 [shape = 'u8[4096]{0}', space=vmem, size = 0x1000, scoped, tag = 'scoped mem for output reshape']
    #allocation1 [shape = 'u8[8192]{0}', space=vmem, size = 0x2000, scoped, tag = 'scoped mem for input reshape']
    %s3 = sshllo.u32 0, 2
    %s4 = scalar_lea.vmem %s0, 2
    %v5 = vld [vmem:[%s4] sm:%s3]
    %s6 = scalar_lea.vmem [#allocation1], 8
    %7 = vst [vmem:[%s6] sm:%s3] %v5
    %v8 = vld [vmem:[%s0] sm:%s3]
    %9 = vst [vmem:[#allocation1] sm:%s3] %v8
    %s10 = smov 3
    %v11 = vld [vmem:[#allocation1] ss:$8 sm:%s10]
    %vm12 = vcmask 15360
    %13 = vst.msk [vmem:[#allocation0] sm:$0x3] %vm12, %v11
    %s14 = scalar_lea.vmem [#allocation1], 1
    %s15 = smov 3
    %v16 = vld [vmem:[%s14] ss:$8 sm:%s15]
    %17 = vrot.lane.b32.xlu0 %v16, 2
    %v18 = vpop.permute.xlu0 %17
    %vm19 = vcmask 31760
    %20 = vst.msk [vmem:[#allocation0] sm:$0x3] %vm19, %v18
    %s22 = sshllo.u32 0, 2
    %v24 = vld [vmem:[#allocation0] sm:%s22]
    %s25 = sshllo.u32 0, 2
    %26 = vst [vmem:[%s1] sm:%s25] %v24

// kernel: spatial_pyramid_pooling.1
$region0: #{spatial_pyramid_pooling.1}
  #allocation0 [shape = 'u32[]', space=smem, size = 0x4, offset = 0x4, fixed_abs, tag = 'smem constant byte address 0x4 - core index']
  #allocation1 [shape = 'u32[144,128]{1,0:T(1,128)}', space=vmem, size = 0x12000, scoped, tag = 'internal scratch']
  %s0 = inlined_call_operand.vmem [shape: f32[2,2048], index: 0, kind: input, shape index: {}]
  %s1 = inlined_call_operand.hbm [shape: f32[2048,128], index: 1, kind: input, shape index: {}]
  %s2 = inlined_call_operand.vmem [shape: f32[2,128], index: 2, kind: output, shape index: {}]
  %s3 = sld [smem:[#allocation0]]
  $region22: #{spatial_pyramid_pooling.1} parent=0
    _
  %s5 = ssub.s32 1, %s3
  %s6 = scalar_select 0, %s5, %s3
  $region1: #{spatial_pyramid_pooling.1} parent=0
    #allocation2 [shape = 'u8[1048576]{0}', space=vmem, size = 0x100000, scoped, tag = 'input window, operand 1, single buffered']
    #allocation3 [shape = 's32[1]{0}', space=sflag, size = 0x4, scoped, tag = 'scoped memory for spatial_pyramid_pooling.1']
    %7 = vsyncpa [#allocation3], 0
    // Predicated region
    $region2: #{spatial_pyramid_pooling.1} parent=1 // pred_check
      _
    $region3: #{spatial_pyramid_pooling.1} parent=1 // pred_check_branch
      %9 = sbr.rel (0) target = $region5
    $region4: #{spatial_pyramid_pooling.1} parent=1 // pred_region
      _
    $region5: #{spatial_pyramid_pooling.1} parent=1 // pred_fallthru
      _
    // Predicated region
    $region6: #{spatial_pyramid_pooling.1} parent=1 // pred_check
      _
    $region7: #{spatial_pyramid_pooling.1} parent=1 // pred_check_branch
      %11 = sbr.rel (0) target = $region9
    $region8: #{spatial_pyramid_pooling.1} parent=1 // pred_region
      %s13 = ssub.s32 32768, 32768
      %14 = vsyncadd [#allocation3], %s13
      %s15 = sshll.u32 [#allocation2], 4
      %s16 = int_to_ptr.vmem [resolvable:$true] %s15
      %21 = dma.hbm_to_vmem [thread:$0]  %s1, 32768, %s16, [#allocation3], 128, 128, 8
    $region9: #{spatial_pyramid_pooling.1} parent=1 // pred_fallthru
      _
    // Predicated region
    $region10: #{spatial_pyramid_pooling.1} parent=1 // pred_check
      _
    $region11: #{spatial_pyramid_pooling.1} parent=1 // pred_check_branch
      %23 = sbr.rel (0) target = $region13
    $region12: #{spatial_pyramid_pooling.1} parent=1 // pred_region
      %24 = dma.done [#allocation3], 32768
    $region13: #{spatial_pyramid_pooling.1} parent=1 // pred_fallthru
      _
    %v25 = vld [vmem:[%s0] sm:$0xff]
    %v26 = vld [vmem:[%s0 + $0x8] sm:$0xff]
    %v27 = vld [vmem:[%s0 + $0x10] sm:$0xff]
    %v28 = vld [vmem:[%s0 + $0x18] sm:$0xff]
    %v29 = vld [vmem:[#allocation2] sm:$0xff]
    %v30 = vld [vmem:[#allocation2 + $0x8] sm:$0xff]
    %v31 = vld [vmem:[#allocation2 + $0x10] sm:$0xff]
    %v32 = vld [vmem:[#allocation2 + $0x18] sm:$0xff]
    %v33 = vld [vmem:[#allocation2 + $0x20] sm:$0xff]
    %v34 = vld [vmem:[#allocation2 + $0x28] sm:$0xff]
    %v35 = vld [vmem:[#allocation2 + $0x30] sm:$0xff]
    %v36 = vld [vmem:[#allocation2 + $0x38] sm:$0xff]
    %v37 = vld [vmem:[#allocation2 + $0x40] sm:$0xff]
    %v38 = vld [vmem:[#allocation2 + $0x48] sm:$0xff]
    %v39 = vld [vmem:[#allocation2 + $0x50] sm:$0xff]
    %v40 = vld [vmem:[#allocation2 + $0x58] sm:$0xff]
    %v41 = vld [vmem:[#allocation2 + $0x60] sm:$0xff]
    %v42 = vld [vmem:[#allocation2 + $0x68] sm:$0xff]
    %v43 = vld [vmem:[#allocation2 + $0x70] sm:$0xff]
    %v44 = vld [vmem:[#allocation2 + $0x78] sm:$0xff]
    %v45 = vld [vmem:[#allocation2 + $0x80] sm:$0xff]
    %v46 = vld [vmem:[#allocation2 + $0x88] sm:$0xff]
    %v47 = vld [vmem:[#allocation2 + $0x90] sm:$0xff]
    %v48 = vld [vmem:[#allocation2 + $0x98] sm:$0xff]
    %v49 = vld [vmem:[#allocation2 + $0xa0] sm:$0xff]
    %v50 = vld [vmem:[#allocation2 + $0xa8] sm:$0xff]
    %v51 = vld [vmem:[#allocation2 + $0xb0] sm:$0xff]
    %v52 = vld [vmem:[#allocation2 + $0xb8] sm:$0xff]
    %v53 = vld [vmem:[#allocation2 + $0xc0] sm:$0xff]
    %v54 = vld [vmem:[#allocation2 + $0xc8] sm:$0xff]
    %v55 = vld [vmem:[#allocation2 + $0xd0] sm:$0xff]
    %v56 = vld [vmem:[#allocation2 + $0xd8] sm:$0xff]
    %v57 = vld [vmem:[#allocation2 + $0xe0] sm:$0xff]
    %v58 = vld [vmem:[#allocation2 + $0xe8] sm:$0xff]
    %v59 = vld [vmem:[#allocation2 + $0xf0] sm:$0xff]
    %v60 = vld [vmem:[#allocation2 + $0xf8] sm:$0xff]
    %v61 = vld [vmem:[#allocation2 + $0x100] sm:$0xff]
    %v62 = vld [vmem:[#allocation2 + $0x108] sm:$0xff]
    %v63 = vld [vmem:[#allocation2 + $0x110] sm:$0xff]
    %v64 = vld [vmem:[#allocation2 + $0x118] sm:$0xff]
    %v65 = vld [vmem:[#allocation2 + $0x120] sm:$0xff]
    %v66 = vld [vmem:[#allocation2 + $0x128] sm:$0xff]
    %v67 = vld [vmem:[#allocation2 + $0x130] sm:$0xff]
    %v68 = vld [vmem:[#allocation2 + $0x138] sm:$0xff]
    %v69 = vld [vmem:[#allocation2 + $0x140] sm:$0xff]
    %v70 = vld [vmem:[#allocation2 + $0x148] sm:$0xff]
    %v71 = vld [vmem:[#allocation2 + $0x150] sm:$0xff]
    %v72 = vld [vmem:[#allocation2 + $0x158] sm:$0xff]
    %v73 = vld [vmem:[#allocation2 + $0x160] sm:$0xff]
    %v74 = vld [vmem:[#allocation2 + $0x168] sm:$0xff]
    %v75 = vld [vmem:[#allocation2 + $0x170] sm:$0xff]
    %v76 = vld [vmem:[#allocation2 + $0x178] sm:$0xff]
    %v77 = vld [vmem:[#allocation2 + $0x180] sm:$0xff]
    %v78 = vld [vmem:[#allocation2 + $0x188] sm:$0xff]
    %v79 = vld [vmem:[#allocation2 + $0x190] sm:$0xff]
    %v80 = vld [vmem:[#allocation2 + $0x198] sm:$0xff]
    %v81 = vld [vmem:[#allocation2 + $0x1a0] sm:$0xff]
    %v82 = vld [vmem:[#allocation2 + $0x1a8] sm:$0xff]
    %v83 = vld [vmem:[#allocation2 + $0x1b0] sm:$0xff]
    %v84 = vld [vmem:[#allocation2 + $0x1b8] sm:$0xff]
    %v85 = vld [vmem:[#allocation2 + $0x1c0] sm:$0xff]
    %v86 = vld [vmem:[#allocation2 + $0x1c8] sm:$0xff]
    %v87 = vld [vmem:[#allocation2 + $0x1d0] sm:$0xff]
    %v88 = vld [vmem:[#allocation2 + $0x1d8] sm:$0xff]
    %v89 = vld [vmem:[#allocation2 + $0x1e0] sm:$0xff]
    %v90 = vld [vmem:[#allocation2 + $0x1e8] sm:$0xff]
    %v91 = vld [vmem:[#allocation2 + $0x1f0] sm:$0xff]
    %v92 = vld [vmem:[#allocation2 + $0x1f8] sm:$0xff]
    %v93 = vld [vmem:[#allocation2 + $0x200] sm:$0xff]
    %v94 = vld [vmem:[#allocation2 + $0x208] sm:$0xff]
    %v95 = vld [vmem:[#allocation2 + $0x210] sm:$0xff]
    %v96 = vld [vmem:[#allocation2 + $0x218] sm:$0xff]
    %v97 = vld [vmem:[#allocation2 + $0x220] sm:$0xff]
    %v98 = vld [vmem:[#allocation2 + $0x228] sm:$0xff]
    %v99 = vld [vmem:[#allocation2 + $0x230] sm:$0xff]
    %v100 = vld [vmem:[#allocation2 + $0x238] sm:$0xff]
    %v101 = vld [vmem:[#allocation2 + $0x240] sm:$0xff]
    %v102 = vld [vmem:[#allocation2 + $0x248] sm:$0xff]
    %v103 = vld [vmem:[#allocation2 + $0x250] sm:$0xff]
    %v104 = vld [vmem:[#allocation2 + $0x258] sm:$0xff]
    %v105 = vld [vmem:[#allocation2 + $0x260] sm:$0xff]
    %v106 = vld [vmem:[#allocation2 + $0x268] sm:$0xff]
    %v107 = vld [vmem:[#allocation2 + $0x270] sm:$0xff]
    %v108 = vld [vmem:[#allocation2 + $0x278] sm:$0xff]
    %v109 = vld [vmem:[#allocation2 + $0x280] sm:$0xff]
    %v110 = vld [vmem:[#allocation2 + $0x288] sm:$0xff]
    %v111 = vld [vmem:[#allocation2 + $0x290] sm:$0xff]
    %v112 = vld [vmem:[#allocation2 + $0x298] sm:$0xff]
    %v113 = vld [vmem:[#allocation2 + $0x2a0] sm:$0xff]
    %v114 = vld [vmem:[#allocation2 + $0x2a8] sm:$0xff]
    %v115 = vld [vmem:[#allocation2 + $0x2b0] sm:$0xff]
    %v116 = vld [vmem:[#allocation2 + $0x2b8] sm:$0xff]
    %v117 = vld [vmem:[#allocation2 + $0x2c0] sm:$0xff]
    %v118 = vld [vmem:[#allocation2 + $0x2c8] sm:$0xff]
    %v119 = vld [vmem:[#allocation2 + $0x2d0] sm:$0xff]
    %v120 = vld [vmem:[#allocation2 + $0x2d8] sm:$0xff]
    %v121 = vld [vmem:[#allocation2 + $0x2e0] sm:$0xff]
    %v122 = vld [vmem:[#allocation2 + $0x2e8] sm:$0xff]
    %v123 = vld [vmem:[#allocation2 + $0x2f0] sm:$0xff]
    %v124 = vld [vmem:[#allocation2 + $0x2f8] sm:$0xff]
    %v125 = vld [vmem:[#allocation2 + $0x300] sm:$0xff]
    %v126 = vld [vmem:[#allocation2 + $0x308] sm:$0xff]
    %v127 = vld [vmem:[#allocation2 + $0x310] sm:$0xff]
    %v128 = vld [vmem:[#allocation2 + $0x318] sm:$0xff]
    %v129 = vld [vmem:[#allocation2 + $0x320] sm:$0xff]
    %v130 = vld [vmem:[#allocation2 + $0x328] sm:$0xff]
    %v131 = vld [vmem:[#allocation2 + $0x330] sm:$0xff]
    %v132 = vld [vmem:[#allocation2 + $0x338] sm:$0xff]
    %v133 = vld [vmem:[#allocation2 + $0x340] sm:$0xff]
    %v134 = vld [vmem:[#allocation2 + $0x348] sm:$0xff]
    %v135 = vld [vmem:[#allocation2 + $0x350] sm:$0xff]
    %v136 = vld [vmem:[#allocation2 + $0x358] sm:$0xff]
    %v137 = vld [vmem:[#allocation2 + $0x360] sm:$0xff]
    %v138 = vld [vmem:[#allocation2 + $0x368] sm:$0xff]
    %v139 = vld [vmem:[#allocation2 + $0x370] sm:$0xff]
    %v140 = vld [vmem:[#allocation2 + $0x378] sm:$0xff]
    %v141 = vld [vmem:[#allocation2 + $0x380] sm:$0xff]
    %v142 = vld [vmem:[#allocation2 + $0x388] sm:$0xff]
    %v143 = vld [vmem:[#allocation2 + $0x390] sm:$0xff]
    %v144 = vld [vmem:[#allocation2 + $0x398] sm:$0xff]
    %v145 = vld [vmem:[#allocation2 + $0x3a0] sm:$0xff]
    %v146 = vld [vmem:[#allocation2 + $0x3a8] sm:$0xff]
    %v147 = vld [vmem:[#allocation2 + $0x3b0] sm:$0xff]
    %v148 = vld [vmem:[#allocation2 + $0x3b8] sm:$0xff]
    %v149 = vld [vmem:[#allocation2 + $0x3c0] sm:$0xff]
    %v150 = vld [vmem:[#allocation2 + $0x3c8] sm:$0xff]
    %v151 = vld [vmem:[#allocation2 + $0x3d0] sm:$0xff]
    %v152 = vld [vmem:[#allocation2 + $0x3d8] sm:$0xff]
    %v153 = vld [vmem:[#allocation2 + $0x3e0] sm:$0xff]
    %v154 = vld [vmem:[#allocation2 + $0x3e8] sm:$0xff]
    %v155 = vld [vmem:[#allocation2 + $0x3f0] sm:$0xff]
    %v156 = vld [vmem:[#allocation2 + $0x3f8] sm:$0xff]
    %v157 = vld [vmem:[#allocation2 + $0x400] sm:$0xff]
    %v158 = vld [vmem:[#allocation2 + $0x408] sm:$0xff]
    %v159 = vld [vmem:[#allocation2 + $0x410] sm:$0xff]
    %v160 = vld [vmem:[#allocation2 + $0x418] sm:$0xff]
    %v161 = vld [vmem:[#allocation2 + $0x420] sm:$0xff]
    %v162 = vld [vmem:[#allocation2 + $0x428] sm:$0xff]
    %v163 = vld [vmem:[#allocation2 + $0x430] sm:$0xff]
    %v164 = vld [vmem:[#allocation2 + $0x438] sm:$0xff]
    %v165 = vld [vmem:[#allocation2 + $0x440] sm:$0xff]
    %v166 = vld [vmem:[#allocation2 + $0x448] sm:$0xff]
    %v167 = vld [vmem:[#allocation2 + $0x450] sm:$0xff]
    %v168 = vld [vmem:[#allocation2 + $0x458] sm:$0xff]
    %v169 = vld [vmem:[#allocation2 + $0x460] sm:$0xff]
    %v170 = vld [vmem:[#allocation2 + $0x468] sm:$0xff]
    %v171 = vld [vmem:[#allocation2 + $0x470] sm:$0xff]
    %v172 = vld [vmem:[#allocation2 + $0x478] sm:$0xff]
    %v173 = vld [vmem:[#allocation2 + $0x480] sm:$0xff]
    %v174 = vld [vmem:[#allocation2 + $0x488] sm:$0xff]
    %v175 = vld [vmem:[#allocation2 + $0x490] sm:$0xff]
    %v176 = vld [vmem:[#allocation2 + $0x498] sm:$0xff]
    %v177 = vld [vmem:[#allocation2 + $0x4a0] sm:$0xff]
    %v178 = vld [vmem:[#allocation2 + $0x4a8] sm:$0xff]
    %v179 = vld [vmem:[#allocation2 + $0x4b0] sm:$0xff]
    %v180 = vld [vmem:[#allocation2 + $0x4b8] sm:$0xff]
    %v181 = vld [vmem:[#allocation2 + $0x4c0] sm:$0xff]
    %v182 = vld [vmem:[#allocation2 + $0x4c8] sm:$0xff]
    %v183 = vld [vmem:[#allocation2 + $0x4d0] sm:$0xff]
    %v184 = vld [vmem:[#allocation2 + $0x4d8] sm:$0xff]
    %v185 = vld [vmem:[#allocation2 + $0x4e0] sm:$0xff]
    %v186 = vld [vmem:[#allocation2 + $0x4e8] sm:$0xff]
    %v187 = vld [vmem:[#allocation2 + $0x4f0] sm:$0xff]
    %v188 = vld [vmem:[#allocation2 + $0x4f8] sm:$0xff]
    %v189 = vld [vmem:[#allocation2 + $0x500] sm:$0xff]
    %v190 = vld [vmem:[#allocation2 + $0x508] sm:$0xff]
    %v191 = vld [vmem:[#allocation2 + $0x510] sm:$0xff]
    %v192 = vld [vmem:[#allocation2 + $0x518] sm:$0xff]
    %v193 = vld [vmem:[#allocation2 + $0x520] sm:$0xff]
    %v194 = vld [vmem:[#allocation2 + $0x528] sm:$0xff]
    %v195 = vld [vmem:[#allocation2 + $0x530] sm:$0xff]
    %v196 = vld [vmem:[#allocation2 + $0x538] sm:$0xff]
    %v197 = vld [vmem:[#allocation2 + $0x540] sm:$0xff]
    %v198 = vld [vmem:[#allocation2 + $0x548] sm:$0xff]
    %v199 = vld [vmem:[#allocation2 + $0x550] sm:$0xff]
    %v200 = vld [vmem:[#allocation2 + $0x558] sm:$0xff]
    %v201 = vld [vmem:[#allocation2 + $0x560] sm:$0xff]
    %v202 = vld [vmem:[#allocation2 + $0x568] sm:$0xff]
    %v203 = vld [vmem:[#allocation2 + $0x570] sm:$0xff]
    %v204 = vld [vmem:[#allocation2 + $0x578] sm:$0xff]
    %v205 = vld [vmem:[#allocation2 + $0x580] sm:$0xff]
    %v206 = vld [vmem:[#allocation2 + $0x588] sm:$0xff]
    %v207 = vld [vmem:[#allocation2 + $0x590] sm:$0xff]
    %v208 = vld [vmem:[#allocation2 + $0x598] sm:$0xff]
    %v209 = vld [vmem:[#allocation2 + $0x5a0] sm:$0xff]
    %v210 = vld [vmem:[#allocation2 + $0x5a8] sm:$0xff]
    %v211 = vld [vmem:[#allocation2 + $0x5b0] sm:$0xff]
    %v212 = vld [vmem:[#allocation2 + $0x5b8] sm:$0xff]
    %v213 = vld [vmem:[#allocation2 + $0x5c0] sm:$0xff]
    %v214 = vld [vmem:[#allocation2 + $0x5c8] sm:$0xff]
    %v215 = vld [vmem:[#allocation2 + $0x5d0] sm:$0xff]
    %v216 = vld [vmem:[#allocation2 + $0x5d8] sm:$0xff]
    %v217 = vld [vmem:[#allocation2 + $0x5e0] sm:$0xff]
    %v218 = vld [vmem:[#allocation2 + $0x5e8] sm:$0xff]
    %v219 = vld [vmem:[#allocation2 + $0x5f0] sm:$0xff]
    %v220 = vld [vmem:[#allocation2 + $0x5f8] sm:$0xff]
    %v221 = vld [vmem:[#allocation2 + $0x600] sm:$0xff]
    %v222 = vld [vmem:[#allocation2 + $0x608] sm:$0xff]
    %v223 = vld [vmem:[#allocation2 + $0x610] sm:$0xff]
    %v224 = vld [vmem:[#allocation2 + $0x618] sm:$0xff]
    %v225 = vld [vmem:[#allocation2 + $0x620] sm:$0xff]
    %v226 = vld [vmem:[#allocation2 + $0x628] sm:$0xff]
    %v227 = vld [vmem:[#allocation2 + $0x630] sm:$0xff]
    %v228 = vld [vmem:[#allocation2 + $0x638] sm:$0xff]
    %v229 = vld [vmem:[#allocation2 + $0x640] sm:$0xff]
    %v230 = vld [vmem:[#allocation2 + $0x648] sm:$0xff]
    %v231 = vld [vmem:[#allocation2 + $0x650] sm:$0xff]
    %v232 = vld [vmem:[#allocation2 + $0x658] sm:$0xff]
    %v233 = vld [vmem:[#allocation2 + $0x660] sm:$0xff]
    %v234 = vld [vmem:[#allocation2 + $0x668] sm:$0xff]
    %v235 = vld [vmem:[#allocation2 + $0x670] sm:$0xff]
    %v236 = vld [vmem:[#allocation2 + $0x678] sm:$0xff]
    %v237 = vld [vmem:[#allocation2 + $0x680] sm:$0xff]
    %v238 = vld [vmem:[#allocation2 + $0x688] sm:$0xff]
    %v239 = vld [vmem:[#allocation2 + $0x690] sm:$0xff]
    %v240 = vld [vmem:[#allocation2 + $0x698] sm:$0xff]
    %v241 = vld [vmem:[#allocation2 + $0x6a0] sm:$0xff]
    %v242 = vld [vmem:[#allocation2 + $0x6a8] sm:$0xff]
    %v243 = vld [vmem:[#allocation2 + $0x6b0] sm:$0xff]
    %v244 = vld [vmem:[#allocation2 + $0x6b8] sm:$0xff]
    %v245 = vld [vmem:[#allocation2 + $0x6c0] sm:$0xff]
    %v246 = vld [vmem:[#allocation2 + $0x6c8] sm:$0xff]
    %v247 = vld [vmem:[#allocation2 + $0x6d0] sm:$0xff]
    %v248 = vld [vmem:[#allocation2 + $0x6d8] sm:$0xff]
    %v249 = vld [vmem:[#allocation2 + $0x6e0] sm:$0xff]
    %v250 = vld [vmem:[#allocation2 + $0x6e8] sm:$0xff]
    %v251 = vld [vmem:[#allocation2 + $0x6f0] sm:$0xff]
    %v252 = vld [vmem:[#allocation2 + $0x6f8] sm:$0xff]
    %v253 = vld [vmem:[#allocation2 + $0x700] sm:$0xff]
    %v254 = vld [vmem:[#allocation2 + $0x708] sm:$0xff]
    %v255 = vld [vmem:[#allocation2 + $0x710] sm:$0xff]
    %v256 = vld [vmem:[#allocation2 + $0x718] sm:$0xff]
    %v257 = vld [vmem:[#allocation2 + $0x720] sm:$0xff]
    %v258 = vld [vmem:[#allocation2 + $0x728] sm:$0xff]
    %v259 = vld [vmem:[#allocation2 + $0x730] sm:$0xff]
    %v260 = vld [vmem:[#allocation2 + $0x738] sm:$0xff]
    %v261 = vld [vmem:[#allocation2 + $0x740] sm:$0xff]
    %v262 = vld [vmem:[#allocation2 + $0x748] sm:$0xff]
    %v263 = vld [vmem:[#allocation2 + $0x750] sm:$0xff]
    %v264 = vld [vmem:[#allocation2 + $0x758] sm:$0xff]
    %v265 = vld [vmem:[#allocation2 + $0x760] sm:$0xff]
    %v266 = vld [vmem:[#allocation2 + $0x768] sm:$0xff]
    %v267 = vld [vmem:[#allocation2 + $0x770] sm:$0xff]
    %v268 = vld [vmem:[#allocation2 + $0x778] sm:$0xff]
    %v269 = vld [vmem:[#allocation2 + $0x780] sm:$0xff]
    %v270 = vld [vmem:[#allocation2 + $0x788] sm:$0xff]
    %v271 = vld [vmem:[#allocation2 + $0x790] sm:$0xff]
    %v272 = vld [vmem:[#allocation2 + $0x798] sm:$0xff]
    %v273 = vld [vmem:[#allocation2 + $0x7a0] sm:$0xff]
    %v274 = vld [vmem:[#allocation2 + $0x7a8] sm:$0xff]
    %v275 = vld [vmem:[#allocation2 + $0x7b0] sm:$0xff]
    %v276 = vld [vmem:[#allocation2 + $0x7b8] sm:$0xff]
    %v277 = vld [vmem:[#allocation2 + $0x7c0] sm:$0xff]
    %v278 = vld [vmem:[#allocation2 + $0x7c8] sm:$0xff]
    %v279 = vld [vmem:[#allocation2 + $0x7d0] sm:$0xff]
    %v280 = vld [vmem:[#allocation2 + $0x7d8] sm:$0xff]
    %v281 = vld [vmem:[#allocation2 + $0x7e0] sm:$0xff]
    %v282 = vld [vmem:[#allocation2 + $0x7e8] sm:$0xff]
    %v283 = vld [vmem:[#allocation2 + $0x7f0] sm:$0xff]
    %v284 = vld [vmem:[#allocation2 + $0x7f8] sm:$0xff]
    %v289 = vcombine.high %v25, %v25
    %v291 = vunpack.c.l.s4 1983009808
    %v292 = vunpack.c.0.s8 %v291
    %v293 = vlaneseq
    %v294 = vshrl.u32 %v293, 7
    %v295 = vsub.s32 %v292, %v294
    %v296 = vrot.slane %v25, %v295
    %v298 = vunpack.c.l.s4 1983009808
    %v299 = vunpack.c.0.s8 %v298
    %v300 = vlaneseq
    %v301 = vshrl.u32 %v300, 7
    %v302 = vsub.s32 %v299, %v301
    %v303 = vrot.slane %v289, %v302
    %v304 = vcombine.high %v296, %v296
    %v305 = vcombine.high %v303, %v303
    %v306 = vcombine.high %v26, %v26
    %v308 = vunpack.c.l.s4 1983009808
    %v309 = vunpack.c.0.s8 %v308
    %v310 = vlaneseq
    %v311 = vshrl.u32 %v310, 7
    %v312 = vsub.s32 %v309, %v311
    %v313 = vrot.slane %v26, %v312
    %v315 = vunpack.c.l.s4 1983009808
    %v316 = vunpack.c.0.s8 %v315
    %v317 = vlaneseq
    %v318 = vshrl.u32 %v317, 7
    %v319 = vsub.s32 %v316, %v318
    %v320 = vrot.slane %v306, %v319
    %v321 = vcombine.high %v313, %v313
    %v322 = vcombine.high %v320, %v320
    %v323 = vcombine.high %v27, %v27
    %v325 = vunpack.c.l.s4 1983009808
    %v326 = vunpack.c.0.s8 %v325
    %v327 = vlaneseq
    %v328 = vshrl.u32 %v327, 7
    %v329 = vsub.s32 %v326, %v328
    %v330 = vrot.slane %v27, %v329
    %v332 = vunpack.c.l.s4 1983009808
    %v333 = vunpack.c.0.s8 %v332
    %v334 = vlaneseq
    %v335 = vshrl.u32 %v334, 7
    %v336 = vsub.s32 %v333, %v335
    %v337 = vrot.slane %v323, %v336
    %v338 = vcombine.high %v330, %v330
    %v339 = vcombine.high %v337, %v337
    %v340 = vcombine.high %v28, %v28
    %v342 = vunpack.c.l.s4 1983009808
    %v343 = vunpack.c.0.s8 %v342
    %v344 = vlaneseq
    %v345 = vshrl.u32 %v344, 7
    %v346 = vsub.s32 %v343, %v345
    %v347 = vrot.slane %v28, %v346
    %v349 = vunpack.c.l.s4 1983009808
    %v350 = vunpack.c.0.s8 %v349
    %v351 = vlaneseq
    %v352 = vshrl.u32 %v351, 7
    %v353 = vsub.s32 %v350, %v352
    %v354 = vrot.slane %v340, %v353
    %v355 = vcombine.high %v347, %v347
    %v356 = vcombine.high %v354, %v354
    %373 = vmatprep.subr.mxu0 0.0
    %374 = vmatpush1.msra.mxu0 %v29
    %375 = vmatprep.subr.mxu0 0.0
    %376 = vmatpush1.msra.mxu0 %v30
    %377 = vmatprep.subr.mxu0 0.0
    %378 = vmatpush1.msra.mxu0 %v31
    %379 = vmatprep.subr.mxu0 0.0
    %380 = vmatpush1.msra.mxu0 %v32
    %381 = vmatprep.subr.mxu0 0.0
    %382 = vmatpush1.msra.mxu0 %v33
    %383 = vmatprep.subr.mxu0 0.0
    %384 = vmatpush1.msra.mxu0 %v34
    %385 = vmatprep.subr.mxu0 0.0
    %386 = vmatpush1.msra.mxu0 %v35
    %387 = vmatprep.subr.mxu0 0.0
    %388 = vmatpush1.msra.mxu0 %v36
    %389 = vmatprep.subr.mxu0 0.0
    %390 = vmatpush1.msra.mxu0 %v37
    %391 = vmatprep.subr.mxu0 0.0
    %392 = vmatpush1.msra.mxu0 %v38
    %393 = vmatprep.subr.mxu0 0.0
    %394 = vmatpush1.msra.mxu0 %v39
    %395 = vmatprep.subr.mxu0 0.0
    %396 = vmatpush1.msra.mxu0 %v40
    %397 = vmatprep.subr.mxu0 0.0
    %398 = vmatpush1.msra.mxu0 %v41
    %399 = vmatprep.subr.mxu0 0.0
    %400 = vmatpush1.msra.mxu0 %v42
    %401 = vmatprep.subr.mxu0 0.0
    %402 = vmatpush1.msra.mxu0 %v43
    %403 = vmatprep.subr.mxu0 0.0
    %404 = vmatpush1.msra.mxu0 %v44
    %405 = vmatprep.subr.mxu0 0.0
    %406 = vmatpush1.msra.mxu0 %v45
    %407 = vmatprep.subr.mxu0 0.0
    %408 = vmatpush1.msra.mxu0 %v46
    %409 = vmatprep.subr.mxu0 0.0
    %410 = vmatpush1.msra.mxu0 %v47
    %411 = vmatprep.subr.mxu0 0.0
    %412 = vmatpush1.msra.mxu0 %v48
    %413 = vmatprep.subr.mxu0 0.0
    %414 = vmatpush1.msra.mxu0 %v49
    %415 = vmatprep.subr.mxu0 0.0
    %416 = vmatpush1.msra.mxu0 %v50
    %417 = vmatprep.subr.mxu0 0.0
    %418 = vmatpush1.msra.mxu0 %v51
    %419 = vmatprep.subr.mxu0 0.0
    %420 = vmatpush1.msra.mxu0 %v52
    %421 = vmatprep.subr.mxu0 0.0
    %422 = vmatpush1.msra.mxu0 %v53
    %423 = vmatprep.subr.mxu0 0.0
    %424 = vmatpush1.msra.mxu0 %v54
    %425 = vmatprep.subr.mxu0 0.0
    %426 = vmatpush1.msra.mxu0 %v55
    %427 = vmatprep.subr.mxu0 0.0
    %428 = vmatpush1.msra.mxu0 %v56
    %429 = vmatprep.subr.mxu0 0.0
    %430 = vmatpush1.msra.mxu0 %v57
    %431 = vmatprep.subr.mxu0 0.0
    %432 = vmatpush1.msra.mxu0 %v58
    %433 = vmatprep.subr.mxu0 0.0
    %434 = vmatpush1.msra.mxu0 %v59
    %435 = vmatprep.subr.mxu0 0.0
    %436 = vmatpush1.msra.mxu0 %v60
    %437 = vmatprep.mubr.f32.mxu0 %v304
    %438 = vmatmul.mubr.f32.gmra.mrb[0].mxu0 %v296
    %v439 = vpop.f32.mrb[0].mxu0
    %v440 = vadd.f32 0.0, %v439
    %v441 = vpop.f32.mrb[0].mxu0
    %442 = vdwg.mxu0
    %443 = vmatprep.subr.mxu0 0.0
    %444 = vmatpush1.msra.mxu0 %v61
    %445 = vmatprep.subr.mxu0 0.0
    %446 = vmatpush1.msra.mxu0 %v62
    %447 = vmatprep.subr.mxu0 0.0
    %448 = vmatpush1.msra.mxu0 %v63
    %449 = vmatprep.subr.mxu0 0.0
    %450 = vmatpush1.msra.mxu0 %v64
    %451 = vmatprep.subr.mxu0 0.0
    %452 = vmatpush1.msra.mxu0 %v65
    %453 = vmatprep.subr.mxu0 0.0
    %454 = vmatpush1.msra.mxu0 %v66
    %455 = vmatprep.subr.mxu0 0.0
    %456 = vmatpush1.msra.mxu0 %v67
    %457 = vmatprep.subr.mxu0 0.0
    %458 = vmatpush1.msra.mxu0 %v68
    %459 = vmatprep.subr.mxu0 0.0
    %460 = vmatpush1.msra.mxu0 %v69
    %461 = vmatprep.subr.mxu0 0.0
    %462 = vmatpush1.msra.mxu0 %v70
    %463 = vmatprep.subr.mxu0 0.0
    %464 = vmatpush1.msra.mxu0 %v71
    %465 = vmatprep.subr.mxu0 0.0
    %466 = vmatpush1.msra.mxu0 %v72
    %467 = vmatprep.subr.mxu0 0.0
    %468 = vmatpush1.msra.mxu0 %v73
    %469 = vmatprep.subr.mxu0 0.0
    %470 = vmatpush1.msra.mxu0 %v74
    %471 = vmatprep.subr.mxu0 0.0
    %472 = vmatpush1.msra.mxu0 %v75
    %473 = vmatprep.subr.mxu0 0.0
    %474 = vmatpush1.msra.mxu0 %v76
    %475 = vmatprep.subr.mxu0 0.0
    %476 = vmatpush1.msra.mxu0 %v77
    %477 = vmatprep.subr.mxu0 0.0
    %478 = vmatpush1.msra.mxu0 %v78
    %479 = vmatprep.subr.mxu0 0.0
    %480 = vmatpush1.msra.mxu0 %v79
    %481 = vmatprep.subr.mxu0 0.0
    %482 = vmatpush1.msra.mxu0 %v80
    %483 = vmatprep.subr.mxu0 0.0
    %484 = vmatpush1.msra.mxu0 %v81
    %485 = vmatprep.subr.mxu0 0.0
    %486 = vmatpush1.msra.mxu0 %v82
    %487 = vmatprep.subr.mxu0 0.0
    %488 = vmatpush1.msra.mxu0 %v83
    %489 = vmatprep.subr.mxu0 0.0
    %490 = vmatpush1.msra.mxu0 %v84
    %491 = vmatprep.subr.mxu0 0.0
    %492 = vmatpush1.msra.mxu0 %v85
    %493 = vmatprep.subr.mxu0 0.0
    %494 = vmatpush1.msra.mxu0 %v86
    %495 = vmatprep.subr.mxu0 0.0
    %496 = vmatpush1.msra.mxu0 %v87
    %497 = vmatprep.subr.mxu0 0.0
    %498 = vmatpush1.msra.mxu0 %v88
    %499 = vmatprep.subr.mxu0 0.0
    %500 = vmatpush1.msra.mxu0 %v89
    %501 = vmatprep.subr.mxu0 0.0
    %502 = vmatpush1.msra.mxu0 %v90
    %503 = vmatprep.subr.mxu0 0.0
    %504 = vmatpush1.msra.mxu0 %v91
    %505 = vmatprep.subr.mxu0 0.0
    %506 = vmatpush1.msra.mxu0 %v92
    %507 = vmatprep.mubr.f32.mxu0 %v305
    %508 = vmatmul.mubr.f32.gmra.mrb[0].mxu0 %v303
    %v509 = vpop.f32.mrb[0].mxu0
    %v510 = vadd.f32 %v440, %v509
    %v511 = vpop.f32.mrb[0].mxu0
    %512 = vdwg.mxu0
    %513 = vmatprep.subr.mxu0 0.0
    %514 = vmatpush1.msra.mxu0 %v93
    %515 = vmatprep.subr.mxu0 0.0
    %516 = vmatpush1.msra.mxu0 %v94
    %517 = vmatprep.subr.mxu0 0.0
    %518 = vmatpush1.msra.mxu0 %v95
    %519 = vmatprep.subr.mxu0 0.0
    %520 = vmatpush1.msra.mxu0 %v96
    %521 = vmatprep.subr.mxu0 0.0
    %522 = vmatpush1.msra.mxu0 %v97
    %523 = vmatprep.subr.mxu0 0.0
    %524 = vmatpush1.msra.mxu0 %v98
    %525 = vmatprep.subr.mxu0 0.0
    %526 = vmatpush1.msra.mxu0 %v99
    %527 = vmatprep.subr.mxu0 0.0
    %528 = vmatpush1.msra.mxu0 %v100
    %529 = vmatprep.subr.mxu0 0.0
    %530 = vmatpush1.msra.mxu0 %v101
    %531 = vmatprep.subr.mxu0 0.0
    %532 = vmatpush1.msra.mxu0 %v102
    %533 = vmatprep.subr.mxu0 0.0
    %534 = vmatpush1.msra.mxu0 %v103
    %535 = vmatprep.subr.mxu0 0.0
    %536 = vmatpush1.msra.mxu0 %v104
    %537 = vmatprep.subr.mxu0 0.0
    %538 = vmatpush1.msra.mxu0 %v105
    %539 = vmatprep.subr.mxu0 0.0
    %540 = vmatpush1.msra.mxu0 %v106
    %541 = vmatprep.subr.mxu0 0.0
    %542 = vmatpush1.msra.mxu0 %v107
    %543 = vmatprep.subr.mxu0 0.0
    %544 = vmatpush1.msra.mxu0 %v108
    %545 = vmatprep.subr.mxu0 0.0
    %546 = vmatpush1.msra.mxu0 %v109
    %547 = vmatprep.subr.mxu0 0.0
    %548 = vmatpush1.msra.mxu0 %v110
    %549 = vmatprep.subr.mxu0 0.0
    %550 = vmatpush1.msra.mxu0 %v111
    %551 = vmatprep.subr.mxu0 0.0
    %552 = vmatpush1.msra.mxu0 %v112
    %553 = vmatprep.subr.mxu0 0.0
    %554 = vmatpush1.msra.mxu0 %v113
    %555 = vmatprep.subr.mxu0 0.0
    %556 = vmatpush1.msra.mxu0 %v114
    %557 = vmatprep.subr.mxu0 0.0
    %558 = vmatpush1.msra.mxu0 %v115
    %559 = vmatprep.subr.mxu0 0.0
    %560 = vmatpush1.msra.mxu0 %v116
    %561 = vmatprep.subr.mxu0 0.0
    %562 = vmatpush1.msra.mxu0 %v117
    %563 = vmatprep.subr.mxu0 0.0
    %564 = vmatpush1.msra.mxu0 %v118
    %565 = vmatprep.subr.mxu0 0.0
    %566 = vmatpush1.msra.mxu0 %v119
    %567 = vmatprep.subr.mxu0 0.0
    %568 = vmatpush1.msra.mxu0 %v120
    %569 = vmatprep.subr.mxu0 0.0
    %570 = vmatpush1.msra.mxu0 %v121
    %571 = vmatprep.subr.mxu0 0.0
    %572 = vmatpush1.msra.mxu0 %v122
    %573 = vmatprep.subr.mxu0 0.0
    %574 = vmatpush1.msra.mxu0 %v123
    %575 = vmatprep.subr.mxu0 0.0
    %576 = vmatpush1.msra.mxu0 %v124
    %577 = vmatprep.mubr.f32.mxu0 %v321
    %578 = vmatmul.mubr.f32.gmra.mrb[0].mxu0 %v313
    %v579 = vpop.f32.mrb[0].mxu0
    %v580 = vadd.f32 %v510, %v579
    %v581 = vpop.f32.mrb[0].mxu0
    %582 = vdwg.mxu0
    %583 = vmatprep.subr.mxu0 0.0
    %584 = vmatpush1.msra.mxu0 %v125
    %585 = vmatprep.subr.mxu0 0.0
    %586 = vmatpush1.msra.mxu0 %v126
    %587 = vmatprep.subr.mxu0 0.0
    %588 = vmatpush1.msra.mxu0 %v127
    %589 = vmatprep.subr.mxu0 0.0
    %590 = vmatpush1.msra.mxu0 %v128
    %591 = vmatprep.subr.mxu0 0.0
    %592 = vmatpush1.msra.mxu0 %v129
    %593 = vmatprep.subr.mxu0 0.0
    %594 = vmatpush1.msra.mxu0 %v130
    %595 = vmatprep.subr.mxu0 0.0
    %596 = vmatpush1.msra.mxu0 %v131
    %597 = vmatprep.subr.mxu0 0.0
    %598 = vmatpush1.msra.mxu0 %v132
    %599 = vmatprep.subr.mxu0 0.0
    %600 = vmatpush1.msra.mxu0 %v133
    %601 = vmatprep.subr.mxu0 0.0
    %602 = vmatpush1.msra.mxu0 %v134
    %603 = vmatprep.subr.mxu0 0.0
    %604 = vmatpush1.msra.mxu0 %v135
    %605 = vmatprep.subr.mxu0 0.0
    %606 = vmatpush1.msra.mxu0 %v136
    %607 = vmatprep.subr.mxu0 0.0
    %608 = vmatpush1.msra.mxu0 %v137
    %609 = vmatprep.subr.mxu0 0.0
    %610 = vmatpush1.msra.mxu0 %v138
    %611 = vmatprep.subr.mxu0 0.0
    %612 = vmatpush1.msra.mxu0 %v139
    %613 = vmatprep.subr.mxu0 0.0
    %614 = vmatpush1.msra.mxu0 %v140
    %615 = vmatprep.subr.mxu0 0.0
    %616 = vmatpush1.msra.mxu0 %v141
    %617 = vmatprep.subr.mxu0 0.0
    %618 = vmatpush1.msra.mxu0 %v142
    %619 = vmatprep.subr.mxu0 0.0
    %620 = vmatpush1.msra.mxu0 %v143
    %621 = vmatprep.subr.mxu0 0.0
    %622 = vmatpush1.msra.mxu0 %v144
    %623 = vmatprep.subr.mxu0 0.0
    %624 = vmatpush1.msra.mxu0 %v145
    %625 = vmatprep.subr.mxu0 0.0
    %626 = vmatpush1.msra.mxu0 %v146
    %627 = vmatprep.subr.mxu0 0.0
    %628 = vmatpush1.msra.mxu0 %v147
    %629 = vmatprep.subr.mxu0 0.0
    %630 = vmatpush1.msra.mxu0 %v148
    %631 = vmatprep.subr.mxu0 0.0
    %632 = vmatpush1.msra.mxu0 %v149
    %633 = vmatprep.subr.mxu0 0.0
    %634 = vmatpush1.msra.mxu0 %v150
    %635 = vmatprep.subr.mxu0 0.0
    %636 = vmatpush1.msra.mxu0 %v151
    %637 = vmatprep.subr.mxu0 0.0
    %638 = vmatpush1.msra.mxu0 %v152
    %639 = vmatprep.subr.mxu0 0.0
    %640 = vmatpush1.msra.mxu0 %v153
    %641 = vmatprep.subr.mxu0 0.0
    %642 = vmatpush1.msra.mxu0 %v154
    %643 = vmatprep.subr.mxu0 0.0
    %644 = vmatpush1.msra.mxu0 %v155
    %645 = vmatprep.subr.mxu0 0.0
    %646 = vmatpush1.msra.mxu0 %v156
    %647 = vmatprep.mubr.f32.mxu0 %v322
    %648 = vmatmul.mubr.f32.gmra.mrb[0].mxu0 %v320
    %v649 = vpop.f32.mrb[0].mxu0
    %v650 = vadd.f32 %v580, %v649
    %v651 = vpop.f32.mrb[0].mxu0
    %652 = vdwg.mxu0
    %653 = vmatprep.subr.mxu0 0.0
    %654 = vmatpush1.msra.mxu0 %v157
    %655 = vmatprep.subr.mxu0 0.0
    %656 = vmatpush1.msra.mxu0 %v158
    %657 = vmatprep.subr.mxu0 0.0
    %658 = vmatpush1.msra.mxu0 %v159
    %659 = vmatprep.subr.mxu0 0.0
    %660 = vmatpush1.msra.mxu0 %v160
    %661 = vmatprep.subr.mxu0 0.0
    %662 = vmatpush1.msra.mxu0 %v161
    %663 = vmatprep.subr.mxu0 0.0
    %664 = vmatpush1.msra.mxu0 %v162
    %665 = vmatprep.subr.mxu0 0.0
    %666 = vmatpush1.msra.mxu0 %v163
    %667 = vmatprep.subr.mxu0 0.0
    %668 = vmatpush1.msra.mxu0 %v164
    %669 = vmatprep.subr.mxu0 0.0
    %670 = vmatpush1.msra.mxu0 %v165
    %671 = vmatprep.subr.mxu0 0.0
    %672 = vmatpush1.msra.mxu0 %v166
    %673 = vmatprep.subr.mxu0 0.0
    %674 = vmatpush1.msra.mxu0 %v167
    %675 = vmatprep.subr.mxu0 0.0
    %676 = vmatpush1.msra.mxu0 %v168
    %677 = vmatprep.subr.mxu0 0.0
    %678 = vmatpush1.msra.mxu0 %v169
    %679 = vmatprep.subr.mxu0 0.0
    %680 = vmatpush1.msra.mxu0 %v170
    %681 = vmatprep.subr.mxu0 0.0
    %682 = vmatpush1.msra.mxu0 %v171
    %683 = vmatprep.subr.mxu0 0.0
    %684 = vmatpush1.msra.mxu0 %v172
    %685 = vmatprep.subr.mxu0 0.0
    %686 = vmatpush1.msra.mxu0 %v173
    %687 = vmatprep.subr.mxu0 0.0
    %688 = vmatpush1.msra.mxu0 %v174
    %689 = vmatprep.subr.mxu0 0.0
    %690 = vmatpush1.msra.mxu0 %v175
    %691 = vmatprep.subr.mxu0 0.0
    %692 = vmatpush1.msra.mxu0 %v176
    %693 = vmatprep.subr.mxu0 0.0
    %694 = vmatpush1.msra.mxu0 %v177
    %695 = vmatprep.subr.mxu0 0.0
    %696 = vmatpush1.msra.mxu0 %v178
    %697 = vmatprep.subr.mxu0 0.0
    %698 = vmatpush1.msra.mxu0 %v179
    %699 = vmatprep.subr.mxu0 0.0
    %700 = vmatpush1.msra.mxu0 %v180
    %701 = vmatprep.subr.mxu0 0.0
    %702 = vmatpush1.msra.mxu0 %v181
    %703 = vmatprep.subr.mxu0 0.0
    %704 = vmatpush1.msra.mxu0 %v182
    %705 = vmatprep.subr.mxu0 0.0
    %706 = vmatpush1.msra.mxu0 %v183
    %707 = vmatprep.subr.mxu0 0.0
    %708 = vmatpush1.msra.mxu0 %v184
    %709 = vmatprep.subr.mxu0 0.0
    %710 = vmatpush1.msra.mxu0 %v185
    %711 = vmatprep.subr.mxu0 0.0
    %712 = vmatpush1.msra.mxu0 %v186
    %713 = vmatprep.subr.mxu0 0.0
    %714 = vmatpush1.msra.mxu0 %v187
    %715 = vmatprep.subr.mxu0 0.0
    %716 = vmatpush1.msra.mxu0 %v188
    %717 = vmatprep.mubr.f32.mxu0 %v338
    %718 = vmatmul.mubr.f32.gmra.mrb[0].mxu0 %v330
    %v719 = vpop.f32.mrb[0].mxu0
    %v720 = vadd.f32 %v650, %v719
    %v721 = vpop.f32.mrb[0].mxu0
    %722 = vdwg.mxu0
    %723 = vmatprep.subr.mxu0 0.0
    %724 = vmatpush1.msra.mxu0 %v189
    %725 = vmatprep.subr.mxu0 0.0
    %726 = vmatpush1.msra.mxu0 %v190
    %727 = vmatprep.subr.mxu0 0.0
    %728 = vmatpush1.msra.mxu0 %v191
    %729 = vmatprep.subr.mxu0 0.0
    %730 = vmatpush1.msra.mxu0 %v192
    %731 = vmatprep.subr.mxu0 0.0
    %732 = vmatpush1.msra.mxu0 %v193
    %733 = vmatprep.subr.mxu0 0.0
    %734 = vmatpush1.msra.mxu0 %v194
    %735 = vmatprep.subr.mxu0 0.0
    %736 = vmatpush1.msra.mxu0 %v195
    %737 = vmatprep.subr.mxu0 0.0
    %738 = vmatpush1.msra.mxu0 %v196
    %739 = vmatprep.subr.mxu0 0.0
    %740 = vmatpush1.msra.mxu0 %v197
    %741 = vmatprep.subr.mxu0 0.0
    %742 = vmatpush1.msra.mxu0 %v198
    %743 = vmatprep.subr.mxu0 0.0
    %744 = vmatpush1.msra.mxu0 %v199
    %745 = vmatprep.subr.mxu0 0.0
    %746 = vmatpush1.msra.mxu0 %v200
    %747 = vmatprep.subr.mxu0 0.0
    %748 = vmatpush1.msra.mxu0 %v201
    %749 = vmatprep.subr.mxu0 0.0
    %750 = vmatpush1.msra.mxu0 %v202
    %751 = vmatprep.subr.mxu0 0.0
    %752 = vmatpush1.msra.mxu0 %v203
    %753 = vmatprep.subr.mxu0 0.0
    %754 = vmatpush1.msra.mxu0 %v204
    %755 = vmatprep.subr.mxu0 0.0
    %756 = vmatpush1.msra.mxu0 %v205
    %757 = vmatprep.subr.mxu0 0.0
    %758 = vmatpush1.msra.mxu0 %v206
    %759 = vmatprep.subr.mxu0 0.0
    %760 = vmatpush1.msra.mxu0 %v207
    %761 = vmatprep.subr.mxu0 0.0
    %762 = vmatpush1.msra.mxu0 %v208
    %763 = vmatprep.subr.mxu0 0.0
    %764 = vmatpush1.msra.mxu0 %v209
    %765 = vmatprep.subr.mxu0 0.0
    %766 = vmatpush1.msra.mxu0 %v210
    %767 = vmatprep.subr.mxu0 0.0
    %768 = vmatpush1.msra.mxu0 %v211
    %769 = vmatprep.subr.mxu0 0.0
    %770 = vmatpush1.msra.mxu0 %v212
    %771 = vmatprep.subr.mxu0 0.0
    %772 = vmatpush1.msra.mxu0 %v213
    %773 = vmatprep.subr.mxu0 0.0
    %774 = vmatpush1.msra.mxu0 %v214
    %775 = vmatprep.subr.mxu0 0.0
    %776 = vmatpush1.msra.mxu0 %v215
    %777 = vmatprep.subr.mxu0 0.0
    %778 = vmatpush1.msra.mxu0 %v216
    %779 = vmatprep.subr.mxu0 0.0
    %780 = vmatpush1.msra.mxu0 %v217
    %781 = vmatprep.subr.mxu0 0.0
    %782 = vmatpush1.msra.mxu0 %v218
    %783 = vmatprep.subr.mxu0 0.0
    %784 = vmatpush1.msra.mxu0 %v219
    %785 = vmatprep.subr.mxu0 0.0
    %786 = vmatpush1.msra.mxu0 %v220
    %787 = vmatprep.mubr.f32.mxu0 %v339
    %788 = vmatmul.mubr.f32.gmra.mrb[0].mxu0 %v337
    %v789 = vpop.f32.mrb[0].mxu0
    %v790 = vadd.f32 %v720, %v789
    %v791 = vpop.f32.mrb[0].mxu0
    %792 = vdwg.mxu0
    %793 = vmatprep.subr.mxu0 0.0
    %794 = vmatpush1.msra.mxu0 %v221
    %795 = vmatprep.subr.mxu0 0.0
    %796 = vmatpush1.msra.mxu0 %v222
    %797 = vmatprep.subr.mxu0 0.0
    %798 = vmatpush1.msra.mxu0 %v223
    %799 = vmatprep.subr.mxu0 0.0
    %800 = vmatpush1.msra.mxu0 %v224
    %801 = vmatprep.subr.mxu0 0.0
    %802 = vmatpush1.msra.mxu0 %v225
    %803 = vmatprep.subr.mxu0 0.0
    %804 = vmatpush1.msra.mxu0 %v226
    %805 = vmatprep.subr.mxu0 0.0
    %806 = vmatpush1.msra.mxu0 %v227
    %807 = vmatprep.subr.mxu0 0.0
    %808 = vmatpush1.msra.mxu0 %v228
    %809 = vmatprep.subr.mxu0 0.0
    %810 = vmatpush1.msra.mxu0 %v229
    %811 = vmatprep.subr.mxu0 0.0
    %812 = vmatpush1.msra.mxu0 %v230
    %813 = vmatprep.subr.mxu0 0.0
    %814 = vmatpush1.msra.mxu0 %v231
    %815 = vmatprep.subr.mxu0 0.0
    %816 = vmatpush1.msra.mxu0 %v232
    %817 = vmatprep.subr.mxu0 0.0
    %818 = vmatpush1.msra.mxu0 %v233
    %819 = vmatprep.subr.mxu0 0.0
    %820 = vmatpush1.msra.mxu0 %v234
    %821 = vmatprep.subr.mxu0 0.0
    %822 = vmatpush1.msra.mxu0 %v235
    %823 = vmatprep.subr.mxu0 0.0
    %824 = vmatpush1.msra.mxu0 %v236
    %825 = vmatprep.subr.mxu0 0.0
    %826 = vmatpush1.msra.mxu0 %v237
    %827 = vmatprep.subr.mxu0 0.0
    %828 = vmatpush1.msra.mxu0 %v238
    %829 = vmatprep.subr.mxu0 0.0
    %830 = vmatpush1.msra.mxu0 %v239
    %831 = vmatprep.subr.mxu0 0.0
    %832 = vmatpush1.msra.mxu0 %v240
    %833 = vmatprep.subr.mxu0 0.0
    %834 = vmatpush1.msra.mxu0 %v241
    %835 = vmatprep.subr.mxu0 0.0
    %836 = vmatpush1.msra.mxu0 %v242
    %837 = vmatprep.subr.mxu0 0.0
    %838 = vmatpush1.msra.mxu0 %v243
    %839 = vmatprep.subr.mxu0 0.0
    %840 = vmatpush1.msra.mxu0 %v244
    %841 = vmatprep.subr.mxu0 0.0
    %842 = vmatpush1.msra.mxu0 %v245
    %843 = vmatprep.subr.mxu0 0.0
    %844 = vmatpush1.msra.mxu0 %v246
    %845 = vmatprep.subr.mxu0 0.0
    %846 = vmatpush1.msra.mxu0 %v247
    %847 = vmatprep.subr.mxu0 0.0
    %848 = vmatpush1.msra.mxu0 %v248
    %849 = vmatprep.subr.mxu0 0.0
    %850 = vmatpush1.msra.mxu0 %v249
    %851 = vmatprep.subr.mxu0 0.0
    %852 = vmatpush1.msra.mxu0 %v250
    %853 = vmatprep.subr.mxu0 0.0
    %854 = vmatpush1.msra.mxu0 %v251
    %855 = vmatprep.subr.mxu0 0.0
    %856 = vmatpush1.msra.mxu0 %v252
    %857 = vmatprep.mubr.f32.mxu0 %v355
    %858 = vmatmul.mubr.f32.gmra.mrb[0].mxu0 %v347
    %v859 = vpop.f32.mrb[0].mxu0
    %v860 = vadd.f32 %v790, %v859
    %v861 = vpop.f32.mrb[0].mxu0
    %862 = vdwg.mxu0
    %863 = vmatprep.subr.mxu0 0.0
    %864 = vmatpush1.msra.mxu0 %v253
    %865 = vmatprep.subr.mxu0 0.0
    %866 = vmatpush1.msra.mxu0 %v254
    %867 = vmatprep.subr.mxu0 0.0
    %868 = vmatpush1.msra.mxu0 %v255
    %869 = vmatprep.subr.mxu0 0.0
    %870 = vmatpush1.msra.mxu0 %v256
    %871 = vmatprep.subr.mxu0 0.0
    %872 = vmatpush1.msra.mxu0 %v257
    %873 = vmatprep.subr.mxu0 0.0
    %874 = vmatpush1.msra.mxu0 %v258
    %875 = vmatprep.subr.mxu0 0.0
    %876 = vmatpush1.msra.mxu0 %v259
    %877 = vmatprep.subr.mxu0 0.0
    %878 = vmatpush1.msra.mxu0 %v260
    %879 = vmatprep.subr.mxu0 0.0
    %880 = vmatpush1.msra.mxu0 %v261
    %881 = vmatprep.subr.mxu0 0.0
    %882 = vmatpush1.msra.mxu0 %v262
    %883 = vmatprep.subr.mxu0 0.0
    %884 = vmatpush1.msra.mxu0 %v263
    %885 = vmatprep.subr.mxu0 0.0
    %886 = vmatpush1.msra.mxu0 %v264
    %887 = vmatprep.subr.mxu0 0.0
    %888 = vmatpush1.msra.mxu0 %v265
    %889 = vmatprep.subr.mxu0 0.0
    %890 = vmatpush1.msra.mxu0 %v266
    %891 = vmatprep.subr.mxu0 0.0
    %892 = vmatpush1.msra.mxu0 %v267
    %893 = vmatprep.subr.mxu0 0.0
    %894 = vmatpush1.msra.mxu0 %v268
    %895 = vmatprep.subr.mxu0 0.0
    %896 = vmatpush1.msra.mxu0 %v269
    %897 = vmatprep.subr.mxu0 0.0
    %898 = vmatpush1.msra.mxu0 %v270
    %899 = vmatprep.subr.mxu0 0.0
    %900 = vmatpush1.msra.mxu0 %v271
    %901 = vmatprep.subr.mxu0 0.0
    %902 = vmatpush1.msra.mxu0 %v272
    %903 = vmatprep.subr.mxu0 0.0
    %904 = vmatpush1.msra.mxu0 %v273
    %905 = vmatprep.subr.mxu0 0.0
    %906 = vmatpush1.msra.mxu0 %v274
    %907 = vmatprep.subr.mxu0 0.0
    %908 = vmatpush1.msra.mxu0 %v275
    %909 = vmatprep.subr.mxu0 0.0
    %910 = vmatpush1.msra.mxu0 %v276
    %911 = vmatprep.subr.mxu0 0.0
    %912 = vmatpush1.msra.mxu0 %v277
    %913 = vmatprep.subr.mxu0 0.0
    %914 = vmatpush1.msra.mxu0 %v278
    %915 = vmatprep.subr.mxu0 0.0
    %916 = vmatpush1.msra.mxu0 %v279
    %917 = vmatprep.subr.mxu0 0.0
    %918 = vmatpush1.msra.mxu0 %v280
    %919 = vmatprep.subr.mxu0 0.0
    %920 = vmatpush1.msra.mxu0 %v281
    %921 = vmatprep.subr.mxu0 0.0
    %922 = vmatpush1.msra.mxu0 %v282
    %923 = vmatprep.subr.mxu0 0.0
    %924 = vmatpush1.msra.mxu0 %v283
    %925 = vmatprep.subr.mxu0 0.0
    %926 = vmatpush1.msra.mxu0 %v284
    %927 = vmatprep.mubr.f32.mxu0 %v356
    %928 = vmatmul.mubr.f32.gmra.mrb[0].mxu0 %v354
    %v929 = vpop.f32.mrb[0].mxu0
    %v930 = vadd.f32 %v860, %v929
    %v931 = vpop.f32.mrb[0].mxu0
    %932 = vdwg.mxu0
    %933 = vst [vmem:[%s2] sm:$0x3] %v930
    // Predicated region
    $region14: #{spatial_pyramid_pooling.1} parent=1 // pred_check
      _
    $region15: #{spatial_pyramid_pooling.1} parent=1 // pred_check_branch
      %935 = sbr.rel (0) target = $region17
    $region16: #{spatial_pyramid_pooling.1} parent=1 // pred_region
      _
    $region17: #{spatial_pyramid_pooling.1} parent=1 // pred_fallthru
      _
    // Predicated region
    $region18: #{spatial_pyramid_pooling.1} parent=1 // pred_check
      _
    $region19: #{spatial_pyramid_pooling.1} parent=1 // pred_check_branch
      %937 = sbr.rel (0) target = $region21
    $region20: #{spatial_pyramid_pooling.1} parent=1 // pred_region
      _
    $region21: #{spatial_pyramid_pooling.1} parent=1 // pred_fallthru
      _
    %938 = vsyncpa [#allocation3], 1

</llo_original>
